<compile_context>
chip_gen: v7x
topology: tpu7x:2x2x1
jax: 0.10.0
libtpu: 0.0.40
codegen_flags: <defaults>
</compile_context>

<pallas_src>
import functools

import jax
import jax.numpy as jnp
from jax.experimental import pallas as pl
from jax.experimental.pallas import tpu as pltpu

EMB = 512                        # embedding_size (module default)
HID = 512                        # hidden width hard-coded in global_fc
NG = 6                           # num_groups
NUM_MEMBERS = [2, 2, 4, 4, 2, 1]
MAXM = max(NUM_MEMBERS)          # 4
BN_EPS = 1e-5

HEADS_PAD = 128                  # lane-dense fused-head / output width
MEM_OFF = 8                      # member-head columns live in lanes [8, 8+NG*MAXM)


def _round_up(v, m):
    return (v + m - 1) // m * m


def _cdiv(a, b):
    return -(-a // b)


# ----------------------------------------------------------------------------
# Kernel: one batch tile per grid step.  Two bf16 matmuls + bias + ReLU.
# ----------------------------------------------------------------------------
def _kernel(x_ref, w1_ref, b1_ref, wh_ref, bh_ref, out_ref):
    # x:  [TB, EMB]   caller dtype (cast to bf16 here for the MXU)
    # w1: [EMB, HID]  bf16  (eval BatchNorm already folded in)
    # b1: [1, HID]    f32   (folded bias)
    # wh: [HID, 128]  bf16  (group head in cols 0:6, member heads in cols 8:32,
    #                        all other columns exactly zero)
    # bh: [1, 128]    f32
    x = x_ref[...].astype(jnp.bfloat16)

    # global_fc: Linear + folded BatchNorm(eval) + ReLU   (Dropout = identity)
    h = jnp.dot(x, w1_ref[...], preferred_element_type=jnp.float32) + b1_ref[...]
    feat = jnp.maximum(h, 0.0).astype(jnp.bfloat16)                   # [TB, HID]

    # group head + all zero-padded member heads fused into one bf16 MXU push
    heads = jnp.dot(feat, wh_ref[...],
                    preferred_element_type=jnp.float32) + bh_ref[...]  # [TB,128] f32
    out_ref[...] = heads.astype(out_ref.dtype)                         # bf16 slab


# ----------------------------------------------------------------------------
# Wrapper: batch grid (cdiv, partial last tile), resident weights, lane-dense
# bf16 output; argmax + member gather on the tiny slab outside the kernel.
# ----------------------------------------------------------------------------
@functools.partial(jax.jit, static_argnames=("block_b",))
def hierarchical_arcface_forward(x, prep, *, block_b=2048):
    B = x.shape[0]

    # Batch tile: multiple of 16 (bf16 sublane packing); cap at ~ceil(B/2) so
    # there are >= 2 grid steps when possible (keeps both v7x TCs busy).
    tb_cap = max(16, _round_up(_cdiv(B, 2), 16))
    TB = max(16, min(_round_up(block_b, 16), tb_cap))
    nsteps = _cdiv(B, TB)        # last tile may be partial; Pallas masks it

    grid_spec = pltpu.PrefetchScalarGridSpec(
        num_scalar_prefetch=0,
        grid=(nsteps,),
        in_specs=[
            pl.BlockSpec((TB, EMB), lambda i: (i, 0)),          # batch-tiled input
            pl.BlockSpec((EMB, HID), lambda i: (0, 0)),         # resident weights
            pl.BlockSpec((1, HID), lambda i: (0, 0)),
            pl.BlockSpec((HID, HEADS_PAD), lambda i: (0, 0)),
            pl.BlockSpec((1, HEADS_PAD), lambda i: (0, 0)),
        ],
        out_specs=pl.BlockSpec((TB, HEADS_PAD), lambda i: (i, 0)),
    )

    flops = 2 * B * EMB * HID + 2 * B * HID * HEADS_PAD
    bytes_accessed = (B * EMB * x.dtype.itemsize            # x as given
                      + EMB * HID * 2                       # w1f (bf16)
                      + HID * 4                             # b1f
                      + HID * HEADS_PAD * 2                 # w_heads (bf16)
                      + HEADS_PAD * 4                       # b_heads
                      + B * HEADS_PAD * 2)                  # bf16 output slab

    heads = pl.pallas_call(
        _kernel,
        out_shape=jax.ShapeDtypeStruct((B, HEADS_PAD), jnp.bfloat16),
        grid_spec=grid_spec,
        compiler_params=pltpu.CompilerParams(
            dimension_semantics=("parallel",),
            vmem_limit_bytes=32 * 1024 * 1024),
        cost_estimate=pl.CostEstimate(flops=flops, transcendentals=0,
                                      bytes_accessed=bytes_accessed),
    )(x, prep["w1f"], prep["b1f"], prep["w_heads"], prep["b_heads"])

    # Tiny epilogue on the [B, 32]-useful slab (off the MXU, out of the kernel).
    group_logits = heads[:, :NG].astype(jnp.float32)
    predicted_group = jnp.argmax(group_logits, axis=1)
    mem_all = heads[:, MEM_OFF:MEM_OFF + NG * MAXM].astype(jnp.float32)
    mem_all = mem_all.reshape(B, NG, MAXM)
    member_logits = jnp.take_along_axis(
        mem_all, predicted_group[:, None, None], axis=1)[:, 0, :]
    return group_logits, member_logits


# ----------------------------------------------------------------------------
# Parameter construction (PyTorch layout) and one-time inference preparation.
# ----------------------------------------------------------------------------
def make_raw_params(key):
    ks = jax.random.split(key, 9)
    raw = {}
    raw["w1"] = 0.02 * jax.random.normal(ks[0], (HID, EMB), jnp.float32)   # [out,in]
    raw["b1"] = 0.01 * jax.random.normal(ks[1], (HID,), jnp.float32)
    raw["gamma"] = 1.0 + 0.1 * jax.random.normal(ks[2], (HID,), jnp.float32)
    raw["beta"] = 0.1 * jax.random.normal(ks[3], (HID,), jnp.float32)
    raw["rm"] = 0.05 * jax.random.normal(ks[4], (HID,), jnp.float32)
    raw["rv"] = jax.random.uniform(ks[5], (HID,), jnp.float32, 0.5, 1.5)
    raw["wg"] = 0.05 * jax.random.normal(ks[6], (NG, HID), jnp.float32)
    raw["bg"] = 0.01 * jax.random.normal(ks[7], (NG,), jnp.float32)
    raw["wm"], raw["bm"] = [], []
    mk = jax.random.split(ks[8], NG)
    for g, nm in enumerate(NUM_MEMBERS):
        raw["wm"].append(0.05 * jax.random.normal(mk[g], (nm, HID), jnp.float32))
        raw["bm"].append(0.01 * jax.random.normal(jax.random.fold_in(mk[g], 1),
                                                  (nm,), jnp.float32))
    return raw


def prepare_inference_params(raw):
    """One-time prep: fold eval BatchNorm into the first linear, pre-transpose,
    fuse + zero-pad all heads into one lane-dense [HID,128] weight, and cast
    both matmul weights to bf16 (f32 biases, f32 accumulation in-kernel)."""
    scale = raw["gamma"] * jax.lax.rsqrt(raw["rv"] + BN_EPS)             # [HID]
    w1f = raw["w1"].T * scale[None, :]                                   # [EMB, HID]
    b1f = (raw["b1"] - raw["rm"]) * scale + raw["beta"]                  # [HID]

    w_heads = jnp.zeros((HID, HEADS_PAD), jnp.float32)
    b_heads = jnp.zeros((HEADS_PAD,), jnp.float32)
    w_heads = w_heads.at[:, :NG].set(raw["wg"].T)
    b_heads = b_heads.at[:NG].set(raw["bg"])
    for g, nm in enumerate(NUM_MEMBERS):
        c0 = MEM_OFF + g * MAXM
        w_heads = w_heads.at[:, c0:c0 + nm].set(raw["wm"][g].T)
        b_heads = b_heads.at[c0:c0 + nm].set(raw["bm"][g])

    return {
        "w1f": w1f.astype(jnp.bfloat16),
        "b1f": b1f[None, :].astype(jnp.float32),
        "w_heads": w_heads.astype(jnp.bfloat16),
        "b_heads": b_heads[None, :].astype(jnp.float32),
    }


# ----------------------------------------------------------------------------
# Pure-JAX reference mirroring the kernel's math (same bf16 casts / folding).
# ----------------------------------------------------------------------------
def reference_forward(x, prep):
    xb = x.astype(jnp.bfloat16)
    h = jnp.dot(xb, prep["w1f"], preferred_element_type=jnp.float32) + prep["b1f"]
    feat = jnp.maximum(h, 0.0).astype(jnp.bfloat16)
    heads = jnp.dot(feat, prep["w_heads"],
                    preferred_element_type=jnp.float32) + prep["b_heads"]
    heads = heads.astype(jnp.bfloat16).astype(jnp.float32)
    gl = heads[:, :NG]
    pred = jnp.argmax(gl, axis=1)
    mem = heads[:, MEM_OFF:MEM_OFF + NG * MAXM].reshape(-1, NG, MAXM)
    ml = jnp.take_along_axis(mem, pred[:, None, None], axis=1)[:, 0, :]
    return gl, ml


if __name__ == "__main__":
    key = jax.random.PRNGKey(0)
    raw = make_raw_params(key)
    prep = prepare_inference_params(raw)

    B = 200                                   # deliberately not a tile multiple
    x = jax.random.normal(jax.random.fold_in(key, 99), (B, EMB), jnp.float32)

    # block_b=128 -> TB=112 -> 2 grid steps on this small batch (exercises both
    # the pipeline and the masked partial last tile); production default 2048.
    gl, ml = hierarchical_arcface_forward(x, prep, block_b=128)
    jax.block_until_ready((gl, ml))

    gl_ref, ml_ref = reference_forward(x, prep)

    assert gl.shape == (B, NG) and ml.shape == (B, MAXM)
    assert jnp.allclose(gl, gl_ref, atol=1e-2, rtol=1e-2), \
        float(jnp.max(jnp.abs(gl - gl_ref)))

    # Compare member logits only on rows whose group decision is numerically
    # unambiguous (top-2 gap above bf16 / accumulation-order noise).
    top2 = jax.lax.top_k(gl_ref, 2)[0]
    stable = (top2[:, 0] - top2[:, 1]) > 2e-2
    ml_m = jnp.where(stable[:, None], ml, 0.0)
    ml_r = jnp.where(stable[:, None], ml_ref, 0.0)
    assert jnp.allclose(ml_m, ml_r, atol=1e-2, rtol=1e-2), \
        float(jnp.max(jnp.abs(ml_m - ml_r)))

    print("KERNEL_OK")
</pallas_src>

<mosaic_0001>
module attributes {stable_mosaic.version = 11 : i64} {
  func.func @_kernel(%arg0: i32, %arg1: memref<112x512xf32, #tpu.memory_space<vmem>>, %arg2: memref<512x512xbf16, #tpu.memory_space<vmem>>, %arg3: memref<1x512xf32, #tpu.memory_space<vmem>>, %arg4: memref<512x128xbf16, #tpu.memory_space<vmem>>, %arg5: memref<1x128xf32, #tpu.memory_space<vmem>>, %arg6: memref<112x128xbf16, #tpu.memory_space<vmem>>) attributes {dimension_semantics = [#tpu.dimension_semantics<parallel>], iteration_bounds = array<i64: 2>, scalar_prefetch = 0 : i64, scratch_operands = 0 : i64, tpu.core_type = #tpu.core_type<tc>, window_params = [{transform_indices = @transform_0, window_bounds = array<i64: 112, 512>}, {pipeline_mode = #tpu.pipeline_mode<synchronous>, transform_indices = @transform_1, window_bounds = array<i64: 512, 512>}, {pipeline_mode = #tpu.pipeline_mode<synchronous>, transform_indices = @transform_2, window_bounds = array<i64: 1, 512>}, {pipeline_mode = #tpu.pipeline_mode<synchronous>, transform_indices = @transform_3, window_bounds = array<i64: 512, 128>}, {pipeline_mode = #tpu.pipeline_mode<synchronous>, transform_indices = @transform_4, window_bounds = array<i64: 1, 128>}, {transform_indices = @transform_5, window_bounds = array<i64: 112, 128>}]} {
    %c0 = arith.constant 0 : index
    %c0_0 = arith.constant 0 : index
    %0 = vector.load %arg1[%c0, %c0_0] : memref<112x512xf32, #tpu.memory_space<vmem>>, vector<112x512xf32>
    %1 = arith.truncf %0 : vector<112x512xf32> to vector<112x512xbf16>
    %c0_1 = arith.constant 0 : index
    %c0_2 = arith.constant 0 : index
    %2 = vector.load %arg2[%c0_1, %c0_2] : memref<512x512xbf16, #tpu.memory_space<vmem>>, vector<512x512xbf16>
    %cst = arith.constant dense<0.000000e+00> : vector<112x512xf32>
    %3 = tpu.matmul %1, %2, %cst {dimension_numbers = #tpu.dot_dimension_numbers<[1], [0], [0], [1], [0, 0, 1, 1], [], []>} : vector<112x512xbf16>, vector<512x512xbf16>, vector<112x512xf32> -> vector<112x512xf32>
    %c0_3 = arith.constant 0 : index
    %c0_4 = arith.constant 0 : index
    %4 = vector.load %arg3[%c0_3, %c0_4] : memref<1x512xf32, #tpu.memory_space<vmem>>, vector<1x512xf32>
    %5 = vector.broadcast %4 : vector<1x512xf32> to vector<112x512xf32>
    %6 = arith.addf %3, %5 : vector<112x512xf32>
    %cst_5 = arith.constant 0.000000e+00 : f32
    %7 = vector.broadcast %cst_5 : f32 to vector<112x512xf32>
    %8 = arith.maximumf %6, %7 : vector<112x512xf32>
    %9 = arith.truncf %8 : vector<112x512xf32> to vector<112x512xbf16>
    %c0_6 = arith.constant 0 : index
    %c0_7 = arith.constant 0 : index
    %10 = vector.load %arg4[%c0_6, %c0_7] : memref<512x128xbf16, #tpu.memory_space<vmem>>, vector<512x128xbf16>
    %cst_8 = arith.constant dense<0.000000e+00> : vector<112x128xf32>
    %11 = tpu.matmul %9, %10, %cst_8 {dimension_numbers = #tpu.dot_dimension_numbers<[1], [0], [0], [1], [0, 0, 1, 1], [], []>} : vector<112x512xbf16>, vector<512x128xbf16>, vector<112x128xf32> -> vector<112x128xf32>
    %c0_9 = arith.constant 0 : index
    %c0_10 = arith.constant 0 : index
    %12 = vector.load %arg5[%c0_9, %c0_10] : memref<1x128xf32, #tpu.memory_space<vmem>>, vector<1x128xf32>
    %13 = vector.broadcast %12 : vector<1x128xf32> to vector<112x128xf32>
    %14 = arith.addf %11, %13 : vector<112x128xf32>
    %15 = arith.truncf %14 : vector<112x128xf32> to vector<112x128xbf16>
    %c0_11 = arith.constant 0 : index
    %c0_12 = arith.constant 0 : index
    %16 = vector.load %arg6[%c0_11, %c0_12] : memref<112x128xbf16, #tpu.memory_space<vmem>>, vector<112x128xbf16>
    tpu.vector_store %arg6[%c0_11, %c0_12], %15 {strides = array<i32>} : memref<112x128xbf16, #tpu.memory_space<vmem>>, vector<112x128xbf16>,
    return
  }
  func.func @transform_0(%arg0: i32) -> (i32, i32) {
    %c0_i32 = arith.constant 0 : i32
    %c0_i32_0 = arith.constant 0 : i32
    return %arg0, %c0_i32 : i32, i32
  }
  func.func @transform_1(%arg0: i32) -> (i32, i32) {
    %c0_i32 = arith.constant 0 : i32
    %c0_i32_0 = arith.constant 0 : i32
    %c0_i32_1 = arith.constant 0 : i32
    return %c0_i32, %c0_i32_0 : i32, i32
  }
  func.func @transform_2(%arg0: i32) -> (i32, i32) {
    %c0_i32 = arith.constant 0 : i32
    %c0_i32_0 = arith.constant 0 : i32
    %c0_i32_1 = arith.constant 0 : i32
    return %c0_i32, %c0_i32_0 : i32, i32
  }
  func.func @transform_3(%arg0: i32) -> (i32, i32) {
    %c0_i32 = arith.constant 0 : i32
    %c0_i32_0 = arith.constant 0 : i32
    %c0_i32_1 = arith.constant 0 : i32
    return %c0_i32, %c0_i32_0 : i32, i32
  }
  func.func @transform_4(%arg0: i32) -> (i32, i32) {
    %c0_i32 = arith.constant 0 : i32
    %c0_i32_0 = arith.constant 0 : i32
    %c0_i32_1 = arith.constant 0 : i32
    return %c0_i32, %c0_i32_0 : i32, i32
  }
  func.func @transform_5(%arg0: i32) -> (i32, i32) {
    %c0_i32 = arith.constant 0 : i32
    %c0_i32_0 = arith.constant 0 : i32
    return %arg0, %c0_i32 : i32, i32
  }
}

</mosaic_0001>

<llo_original>
// kernel: hierarchical_arcface_forward.1
$region0: #{hierarchical_arcface_forward.1}
  #allocation0 [shape = 'u32[]', space=smem, size = 0x4, offset = 0x4, fixed_abs, tag = 'smem constant byte address 0x4 - core index']
  #allocation1 [shape = 'u32[144,128]{1,0:T(1,128)}', space=vmem, size = 0x12000, scoped, tag = 'internal scratch']
  %s0 = inlined_call_operand.hbm [shape: f32[200,512], index: 0, kind: input, shape index: {}]
  %s1 = inlined_call_operand.hbm [shape: bf16[512,512], index: 1, kind: input, shape index: {}]
  %s2 = inlined_call_operand.vmem [shape: f32[1,512], index: 2, kind: input, shape index: {}]
  %s3 = inlined_call_operand.hbm [shape: bf16[512,128], index: 3, kind: input, shape index: {}]
  %s4 = inlined_call_operand.vmem [shape: f32[1,128], index: 4, kind: input, shape index: {}]
  %s5 = inlined_call_operand.vmem [shape: bf16[200,128], index: 5, kind: output, shape index: {}]
  %s6 = sld [smem:[#allocation0]]
  $region109: #{hierarchical_arcface_forward.1} parent=0
    _
  %s8 = ssub.s32 1, %s6
  %s9 = scalar_select 0, %s8, %s6
  $region1: #{hierarchical_arcface_forward.1} parent=0
    #allocation2 [shape = 'u8[458752]{0}', space=vmem, size = 0x70000, scoped, tag = 'input window, operand 0']
    #allocation3 [shape = 's32[2]{0}', space=sflag, size = 0x8, scoped, tag = 'scoped memory for hierarchical_arcface_forward.1']
    #allocation4 [shape = 'u8[524288]{0}', space=vmem, size = 0x80000, scoped, tag = 'input window, operand 1, single buffered']
    #allocation5 [shape = 's32[1]{0}', space=sflag, size = 0x4, scoped, tag = 'scoped memory for hierarchical_arcface_forward.1']
    #allocation6 [shape = 'u8[131072]{0}', space=vmem, size = 0x20000, scoped, tag = 'input window, operand 3, single buffered']
    #allocation7 [shape = 'u8[57344]{0}', space=vmem, size = 0xe000, scoped, tag = 'output window, operand 0']
    %10 = vsyncpa [#allocation3], 0
    %s11 = scalar_lea.sflag [#allocation3], 1
    %12 = vsyncpa %s11, 0
    %13 = vsyncpa [#allocation5], 0
    loop: start=0, step=1, limit=4
    $region2: #{hierarchical_arcface_forward.1} parent=1 // loop_pre_header
      _
    $region3: #{hierarchical_arcface_forward.1} parent=1 // loop_header
      %s15 = sphi 0, %s19
      %p16 = scmp.ge.s32.totalorder %s15, 4
      %s25 = sphi 0, %s27
      %s28 = sphi 0, %s25
      %s29 = sphi 0, %s28
      %s45 = sphi 0, %s29
      %s49 = sphi 0, %s49
      %s51 = sphi 0, %s49
      %s52 = sphi 0, %s51
      %s66 = sphi 0, %s52
      %s70 = sphi 0, %s70
      %s72 = sphi 0, %s70
      %s73 = sphi 0, %s72
      %s87 = sphi 0, %s73
      %s91 = sphi 0, %s91
      %s93 = sphi 0, %s91
      %s94 = sphi 0, %s93
      %s108 = sphi 0, %s94
      %s112 = sphi 0, %s112
      %s114 = sphi 0, %s112
      %s115 = sphi 0, %s114
      %s129 = sphi 0, %s115
      %s135 = sphi 0, %s137
      %s138 = sphi 0, %s135
      %s139 = sphi 0, %s138
      %s155 = sphi 0, %s139
    $region4: #{hierarchical_arcface_forward.1} parent=1 // loop_header_branch
      %18 = sbr.rel (%p16) target = $region8
    $region5: #{hierarchical_arcface_forward.1} parent=1 // loop_body
      %s20 = ssub.s32 %s15, 1
      %s21 = ssub.s32 %s15, 2
      %s22 = sadd.s32 %s15, 1
      %s23 = ssub.s32 %s15, %s22
      %p24 = scmp.eq.s32.totalorder %s23, 0
      %s26 = sadd.s32 %s25, 1
      %s27 = scalar_select %p24, %s25, %s26
      %p30 = pneg %p24
      %p31 = scmp.eq.s32.totalorder %s15, 1
      %p32 = por %p30, %p31
      %p33 = scmp.ne.s32.totalorder %s25, %s28
      %p34 = scmp.eq.s32.totalorder %s15, 0
      %p35 = por %p33, %p34
      %p36 = scmp.ne.s32.totalorder %s25, %s28
      %p37 = scmp.eq.s32.totalorder %s20, 1
      %p38 = por %p36, %p37
      %p39 = scmp.ne.s32.totalorder %s28, %s29
      %p40 = scmp.eq.s32.totalorder %s20, 0
      %p41 = por %p39, %p40
      %p42 = scmp.ne.s32.totalorder %s28, %s29
      %p43 = scmp.eq.s32.totalorder %s21, 1
      %p44 = por %p42, %p43
      %p46 = scmp.ne.s32.totalorder %s29, %s45
      %p47 = scmp.eq.s32.totalorder %s21, 0
      %p48 = por %p46, %p47
      %s50 = sadd.s32 %s49, 1
      %p53 = scmp.eq.s32.totalorder %s15, 1
      %p54 = scmp.ne.s32.totalorder %s49, %s51
      %p55 = scmp.eq.s32.totalorder %s15, 0
      %p56 = por %p54, %p55
      %p57 = scmp.ne.s32.totalorder %s49, %s51
      %p58 = scmp.eq.s32.totalorder %s20, 1
      %p59 = por %p57, %p58
      %p60 = scmp.ne.s32.totalorder %s51, %s52
      %p61 = scmp.eq.s32.totalorder %s20, 0
      %p62 = por %p60, %p61
      %p63 = scmp.ne.s32.totalorder %s51, %s52
      %p64 = scmp.eq.s32.totalorder %s21, 1
      %p65 = por %p63, %p64
      %p67 = scmp.ne.s32.totalorder %s52, %s66
      %p68 = scmp.eq.s32.totalorder %s21, 0
      %p69 = por %p67, %p68
      %s71 = sadd.s32 %s70, 1
      %p74 = scmp.eq.s32.totalorder %s15, 1
      %p75 = scmp.ne.s32.totalorder %s70, %s72
      %p76 = scmp.eq.s32.totalorder %s15, 0
      %p77 = por %p75, %p76
      %p78 = scmp.ne.s32.totalorder %s70, %s72
      %p79 = scmp.eq.s32.totalorder %s20, 1
      %p80 = por %p78, %p79
      %p81 = scmp.ne.s32.totalorder %s72, %s73
      %p82 = scmp.eq.s32.totalorder %s20, 0
      %p83 = por %p81, %p82
      %p84 = scmp.ne.s32.totalorder %s72, %s73
      %p85 = scmp.eq.s32.totalorder %s21, 1
      %p86 = por %p84, %p85
      %p88 = scmp.ne.s32.totalorder %s73, %s87
      %p89 = scmp.eq.s32.totalorder %s21, 0
      %p90 = por %p88, %p89
      %s92 = sadd.s32 %s91, 1
      %p95 = scmp.eq.s32.totalorder %s15, 1
      %p96 = scmp.ne.s32.totalorder %s91, %s93
      %p97 = scmp.eq.s32.totalorder %s15, 0
      %p98 = por %p96, %p97
      %p99 = scmp.ne.s32.totalorder %s91, %s93
      %p100 = scmp.eq.s32.totalorder %s20, 1
      %p101 = por %p99, %p100
      %p102 = scmp.ne.s32.totalorder %s93, %s94
      %p103 = scmp.eq.s32.totalorder %s20, 0
      %p104 = por %p102, %p103
      %p105 = scmp.ne.s32.totalorder %s93, %s94
      %p106 = scmp.eq.s32.totalorder %s21, 1
      %p107 = por %p105, %p106
      %p109 = scmp.ne.s32.totalorder %s94, %s108
      %p110 = scmp.eq.s32.totalorder %s21, 0
      %p111 = por %p109, %p110
      %s113 = sadd.s32 %s112, 1
      %p116 = scmp.eq.s32.totalorder %s15, 1
      %p117 = scmp.ne.s32.totalorder %s112, %s114
      %p118 = scmp.eq.s32.totalorder %s15, 0
      %p119 = por %p117, %p118
      %p120 = scmp.ne.s32.totalorder %s112, %s114
      %p121 = scmp.eq.s32.totalorder %s20, 1
      %p122 = por %p120, %p121
      %p123 = scmp.ne.s32.totalorder %s114, %s115
      %p124 = scmp.eq.s32.totalorder %s20, 0
      %p125 = por %p123, %p124
      %p126 = scmp.ne.s32.totalorder %s114, %s115
      %p127 = scmp.eq.s32.totalorder %s21, 1
      %p128 = por %p126, %p127
      %p130 = scmp.ne.s32.totalorder %s115, %s129
      %p131 = scmp.eq.s32.totalorder %s21, 0
      %p132 = por %p130, %p131
      %s133 = ssub.s32 %s15, %s22
      %p134 = scmp.eq.s32.totalorder %s133, 0
      %s136 = sadd.s32 %s135, 1
      %s137 = scalar_select %p134, %s135, %s136
      %p140 = pneg %p134
      %p141 = scmp.eq.s32.totalorder %s15, 1
      %p142 = por %p140, %p141
      %p143 = scmp.ne.s32.totalorder %s135, %s138
      %p144 = scmp.eq.s32.totalorder %s15, 0
      %p145 = por %p143, %p144
      %p146 = scmp.ne.s32.totalorder %s135, %s138
      %p147 = scmp.eq.s32.totalorder %s20, 1
      %p148 = por %p146, %p147
      %p149 = scmp.ne.s32.totalorder %s138, %s139
      %p150 = scmp.eq.s32.totalorder %s20, 0
      %p151 = por %p149, %p150
      %p152 = scmp.ne.s32.totalorder %s138, %s139
      %p153 = scmp.eq.s32.totalorder %s21, 1
      %p154 = por %p152, %p153
      %p156 = scmp.ne.s32.totalorder %s139, %s155
      %p157 = scmp.eq.s32.totalorder %s21, 0
      %p158 = por %p156, %p157
      %p159 = scmp.le.s32.totalorder 1, %s15
      %p160 = scmp.lt.s32.totalorder %s15, 3
      %p161 = pnand %p159, %p160
      %p162 = pneg %p161
      // Predicated region
      $region9: #{hierarchical_arcface_forward.1} parent=5 // pred_check
        _
      $region10: #{hierarchical_arcface_forward.1} parent=5 // pred_check_branch
        %164 = sbr.rel (%p161) target = $region12
      $region11: #{hierarchical_arcface_forward.1} parent=5 // pred_region
        %s165 = ssub.s32 %s15, 1
        // Predicated region
        $region13: #{hierarchical_arcface_forward.1} parent=11 // pred_check
          %p166 = pneg %p62
        $region14: #{hierarchical_arcface_forward.1} parent=11 // pred_check_branch
          %168 = sbr.rel (%p166) target = $region16
        $region15: #{hierarchical_arcface_forward.1} parent=11 // pred_region
          %s170 = ssub.s32 16384, 16384
          %171 = vsyncadd [#allocation5], %s170
          %s172 = sshll.u32 [#allocation4], 4
          %s173 = int_to_ptr.vmem [resolvable:$true] %s172
          %178 = dma.hbm_to_vmem [thread:$0]  %s1, 16384, %s173, [#allocation5], 256, 256, 16
        $region16: #{hierarchical_arcface_forward.1} parent=11 // pred_fallthru
          _
        // Predicated region
        $region17: #{hierarchical_arcface_forward.1} parent=11 // pred_check
          %p179 = pneg %p83
        $region18: #{hierarchical_arcface_forward.1} parent=11 // pred_check_branch
          %181 = sbr.rel (%p179) target = $region20
        $region19: #{hierarchical_arcface_forward.1} parent=11 // pred_region
          _
        $region20: #{hierarchical_arcface_forward.1} parent=11 // pred_fallthru
          _
        // Predicated region
        $region21: #{hierarchical_arcface_forward.1} parent=11 // pred_check
          %p182 = pneg %p104
        $region22: #{hierarchical_arcface_forward.1} parent=11 // pred_check_branch
          %184 = sbr.rel (%p182) target = $region24
        $region23: #{hierarchical_arcface_forward.1} parent=11 // pred_region
          %s186 = ssub.s32 4096, 4096
          %187 = vsyncadd [#allocation5], %s186
          %s188 = sshll.u32 [#allocation6], 4
          %s189 = int_to_ptr.vmem [resolvable:$true] %s188
          %194 = dma.hbm_to_vmem [thread:$0]  %s3, 4096, %s189, [#allocation5], 64, 64, 4
        $region24: #{hierarchical_arcface_forward.1} parent=11 // pred_fallthru
          _
        // Predicated region
        $region25: #{hierarchical_arcface_forward.1} parent=11 // pred_check
          %p195 = pneg %p125
        $region26: #{hierarchical_arcface_forward.1} parent=11 // pred_check_branch
          %197 = sbr.rel (%p195) target = $region28
        $region27: #{hierarchical_arcface_forward.1} parent=11 // pred_region
          _
        $region28: #{hierarchical_arcface_forward.1} parent=11 // pred_fallthru
          _
      $region12: #{hierarchical_arcface_forward.1} parent=5 // pred_fallthru
        _
      %p198 = scmp.lt.s32.totalorder %s15, 2
      // Predicated region
      $region29: #{hierarchical_arcface_forward.1} parent=5 // pred_check
        %p199 = pneg %p198
      $region30: #{hierarchical_arcface_forward.1} parent=5 // pred_check_branch
        %201 = sbr.rel (%p199) target = $region32
      $region31: #{hierarchical_arcface_forward.1} parent=5 // pred_region
        // Predicated region
        $region33: #{hierarchical_arcface_forward.1} parent=31 // pred_check
          %p202 = pneg %p35
        $region34: #{hierarchical_arcface_forward.1} parent=31 // pred_check_branch
          %204 = sbr.rel (%p202) target = $region36
        $region35: #{hierarchical_arcface_forward.1} parent=31 // pred_region
          %s205 = sand.u32 %s25, 1
          %s206 = scalar_lea.sflag [#allocation3], %s205
          %s207 = sand.u32 %s25, 1
          %s208 = smul.addr %s207, 448
          %s209 = scalar_lea.vmem [#allocation2], %s208
          %s210 = smul.u32 14, %s15
          %s211 = ssub.s32 25, %s210
          %p212 = scmp.lt.s32.totalorder %s211, 14
          %s213 = scalar_select %p212, %s211, 14
          %s214 = smul.u32 128, %s213
          %s215 = smul.u32 %s214, 4
          %s217 = ssub.s32 7168, %s215
          %218 = vsyncadd %s206, %s217
          %p219 = scmp.ne.s32.totalorder 0, %s215
          %s220 = smul.addr %s210, 4
          %s221 = smul.addr %s220, 128
          %s222 = scalar_lea.hbm %s0, %s221
          %s223 = smul.u32 32, %s213
          %s224 = sshll.u32 %s209, 4
          %s225 = int_to_ptr.vmem [resolvable:$true] %s224
          %s226 = sshll.u32 %s223, 4
          %230 = dma.hbm_to_vmem [thread:$0]  (%p219), %s222, %s226, %s225, %s206, 512, 512, 32
        $region36: #{hierarchical_arcface_forward.1} parent=31 // pred_fallthru
          _
      $region32: #{hierarchical_arcface_forward.1} parent=5 // pred_fallthru
        _
      %p231 = scmp.le.s32.totalorder 1, %s15
      %p232 = scmp.lt.s32.totalorder %s15, 3
      %p233 = pnand %p231, %p232
      %p234 = pneg %p233
      // Predicated region
      $region37: #{hierarchical_arcface_forward.1} parent=5 // pred_check
        _
      $region38: #{hierarchical_arcface_forward.1} parent=5 // pred_check_branch
        %236 = sbr.rel (%p233) target = $region40
      $region39: #{hierarchical_arcface_forward.1} parent=5 // pred_region
        %s237 = ssub.s32 %s15, 1
        %s238 = sand.u32 %s28, 1
        %s239 = scalar_lea.sflag [#allocation3], %s238
        %s240 = sand.u32 %s28, 1
        %s241 = smul.addr %s240, 448
        %s242 = scalar_lea.vmem [#allocation2], %s241
        // Predicated region
        $region41: #{hierarchical_arcface_forward.1} parent=39 // pred_check
          %p243 = pneg %p41
        $region42: #{hierarchical_arcface_forward.1} parent=39 // pred_check_branch
          %245 = sbr.rel (%p243) target = $region44
        $region43: #{hierarchical_arcface_forward.1} parent=39 // pred_region
          %246 = dma.done %s239, 7168
        $region44: #{hierarchical_arcface_forward.1} parent=39 // pred_fallthru
          _
        // Predicated region
        $region45: #{hierarchical_arcface_forward.1} parent=39 // pred_check
          %p247 = pneg %p62
        $region46: #{hierarchical_arcface_forward.1} parent=39 // pred_check_branch
          %249 = sbr.rel (%p247) target = $region48
        $region47: #{hierarchical_arcface_forward.1} parent=39 // pred_region
          %250 = dma.done [#allocation5], 16384
        $region48: #{hierarchical_arcface_forward.1} parent=39 // pred_fallthru
          _
        // Predicated region
        $region49: #{hierarchical_arcface_forward.1} parent=39 // pred_check
          %p251 = pneg %p104
        $region50: #{hierarchical_arcface_forward.1} parent=39 // pred_check_branch
          %253 = sbr.rel (%p251) target = $region52
        $region51: #{hierarchical_arcface_forward.1} parent=39 // pred_region
          %254 = dma.done [#allocation5], 4096
        $region52: #{hierarchical_arcface_forward.1} parent=39 // pred_fallthru
          _
        %s255 = sand.u32 %s28, 1
        %s256 = scalar_lea.sflag [#allocation3], %s255
        %s257 = sand.u32 %s28, 1
        %s258 = smul.addr %s257, 448
        %s259 = scalar_lea.vmem [#allocation2], %s258
        %p260 = pneg %p41
        %p261 = pneg %p38
        %p262 = pneg %p62
        %p263 = pneg %p59
        %p264 = pneg %p83
        %p265 = pneg %p80
        %p266 = pneg %p104
        %p267 = pneg %p101
        %p268 = pneg %p125
        %p269 = pneg %p122
        %p270 = pneg %p151
        %p271 = pneg %p148
        %s272 = sand.u32 %s138, 1
        %s273 = sand.u32 %s138, 1
        %s274 = smul.addr %s273, 56
        %s275 = scalar_lea.vmem [#allocation7], %s274
        %s276 = smul.u32 14, %s20
        %s277 = ssub.s32 25, %s276
        %p278 = scmp.lt.s32.totalorder %s277, 14
        %s279 = scalar_select %p278, %s277, 14
        %s280 = smul.u32 128, %s279
        %s281 = smul.u32 %s280, 4
        %s282 = smul.u32 14, %s20
        %s283 = ssub.s32 25, %s282
        %p284 = scmp.lt.s32.totalorder %s283, 14
        %s285 = scalar_select %p284, %s283, 14
        %s286 = smul.u32 64, %s285
        %v288 = vld [vmem:[%s242] sm:$0xff]
        %v289 = vld [vmem:[%s242 + $0x8] sm:$0xff]
        %v290 = vld [vmem:[%s242 + $0x10] sm:$0xff]
        %v291 = vld [vmem:[%s242 + $0x18] sm:$0xff]
        %v292 = vld [vmem:[%s242 + $0x20] sm:$0xff]
        %v293 = vld [vmem:[%s242 + $0x28] sm:$0xff]
        %v294 = vld [vmem:[%s242 + $0x30] sm:$0xff]
        %v295 = vld [vmem:[%s242 + $0x38] sm:$0xff]
        %v296 = vld [vmem:[%s242 + $0x40] sm:$0xff]
        %v297 = vld [vmem:[%s242 + $0x48] sm:$0xff]
        %v298 = vld [vmem:[%s242 + $0x50] sm:$0xff]
        %v299 = vld [vmem:[%s242 + $0x58] sm:$0xff]
        %v300 = vld [vmem:[%s242 + $0x60] sm:$0xff]
        %v301 = vld [vmem:[%s242 + $0x68] sm:$0xff]
        %v302 = vld [vmem:[%s242 + $0x70] sm:$0xff]
        %v303 = vld [vmem:[%s242 + $0x78] sm:$0xff]
        %v304 = vld [vmem:[%s242 + $0x80] sm:$0xff]
        %v305 = vld [vmem:[%s242 + $0x88] sm:$0xff]
        %v306 = vld [vmem:[%s242 + $0x90] sm:$0xff]
        %v307 = vld [vmem:[%s242 + $0x98] sm:$0xff]
        %v308 = vld [vmem:[%s242 + $0xa0] sm:$0xff]
        %v309 = vld [vmem:[%s242 + $0xa8] sm:$0xff]
        %v310 = vld [vmem:[%s242 + $0xb0] sm:$0xff]
        %v311 = vld [vmem:[%s242 + $0xb8] sm:$0xff]
        %v312 = vld [vmem:[%s242 + $0xc0] sm:$0xff]
        %v313 = vld [vmem:[%s242 + $0xc8] sm:$0xff]
        %v314 = vld [vmem:[%s242 + $0xd0] sm:$0xff]
        %v315 = vld [vmem:[%s242 + $0xd8] sm:$0xff]
        %v316 = vld [vmem:[%s242 + $0xe0] sm:$0xff]
        %v317 = vld [vmem:[%s242 + $0xe8] sm:$0xff]
        %v318 = vld [vmem:[%s242 + $0xf0] sm:$0xff]
        %v319 = vld [vmem:[%s242 + $0xf8] sm:$0xff]
        %v320 = vld [vmem:[%s242 + $0x100] sm:$0xff]
        %v321 = vld [vmem:[%s242 + $0x108] sm:$0xff]
        %v322 = vld [vmem:[%s242 + $0x110] sm:$0xff]
        %v323 = vld [vmem:[%s242 + $0x118] sm:$0xff]
        %v324 = vld [vmem:[%s242 + $0x120] sm:$0xff]
        %v325 = vld [vmem:[%s242 + $0x128] sm:$0xff]
        %v326 = vld [vmem:[%s242 + $0x130] sm:$0xff]
        %v327 = vld [vmem:[%s242 + $0x138] sm:$0xff]
        %v328 = vld [vmem:[%s242 + $0x140] sm:$0xff]
        %v329 = vld [vmem:[%s242 + $0x148] sm:$0xff]
        %v330 = vld [vmem:[%s242 + $0x150] sm:$0xff]
        %v331 = vld [vmem:[%s242 + $0x158] sm:$0xff]
        %v332 = vld [vmem:[%s242 + $0x160] sm:$0xff]
        %v333 = vld [vmem:[%s242 + $0x168] sm:$0xff]
        %v334 = vld [vmem:[%s242 + $0x170] sm:$0xff]
        %v335 = vld [vmem:[%s242 + $0x178] sm:$0xff]
        %v336 = vld [vmem:[%s242 + $0x180] sm:$0xff]
        %v337 = vld [vmem:[%s242 + $0x188] sm:$0xff]
        %v338 = vld [vmem:[%s242 + $0x190] sm:$0xff]
        %v339 = vld [vmem:[%s242 + $0x198] sm:$0xff]
        %v340 = vld [vmem:[%s242 + $0x1a0] sm:$0xff]
        %v341 = vld [vmem:[%s242 + $0x1a8] sm:$0xff]
        %v342 = vld [vmem:[%s242 + $0x1b0] sm:$0xff]
        %v343 = vld [vmem:[%s242 + $0x1b8] sm:$0xff]
        %v344 = vpack.c.bf16 %v292, %v288
        %v345 = vpack.c.bf16 %v293, %v289
        %v346 = vpack.c.bf16 %v294, %v290
        %v347 = vpack.c.bf16 %v295, %v291
        %v348 = vpack.c.bf16 %v300, %v296
        %v349 = vpack.c.bf16 %v301, %v297
        %v350 = vpack.c.bf16 %v302, %v298
        %v351 = vpack.c.bf16 %v303, %v299
        %v352 = vpack.c.bf16 %v308, %v304
        %v353 = vpack.c.bf16 %v309, %v305
        %v354 = vpack.c.bf16 %v310, %v306
        %v355 = vpack.c.bf16 %v311, %v307
        %v356 = vpack.c.bf16 %v316, %v312
        %v357 = vpack.c.bf16 %v317, %v313
        %v358 = vpack.c.bf16 %v318, %v314
        %v359 = vpack.c.bf16 %v319, %v315
        %v360 = vpack.c.bf16 %v324, %v320
        %v361 = vpack.c.bf16 %v325, %v321
        %v362 = vpack.c.bf16 %v326, %v322
        %v363 = vpack.c.bf16 %v327, %v323
        %v364 = vpack.c.bf16 %v332, %v328
        %v365 = vpack.c.bf16 %v333, %v329
        %v366 = vpack.c.bf16 %v334, %v330
        %v367 = vpack.c.bf16 %v335, %v331
        %v368 = vpack.c.bf16 %v340, %v336
        %v369 = vpack.c.bf16 %v341, %v337
        %v370 = vpack.c.bf16 %v342, %v338
        %v371 = vpack.c.bf16 %v343, %v339
        %v372 = vld [vmem:[#allocation4] sm:$0xff]
        %v373 = vld [vmem:[#allocation4 + $0x8] sm:$0xff]
        %v374 = vld [vmem:[#allocation4 + $0x10] sm:$0xff]
        %v375 = vld [vmem:[#allocation4 + $0x18] sm:$0xff]
        %v376 = vld [vmem:[#allocation4 + $0x20] sm:$0xff]
        %v377 = vld [vmem:[#allocation4 + $0x28] sm:$0xff]
        %v378 = vld [vmem:[#allocation4 + $0x30] sm:$0xff]
        %v379 = vld [vmem:[#allocation4 + $0x38] sm:$0xff]
        %v380 = vld [vmem:[#allocation4 + $0x40] sm:$0xff]
        %v381 = vld [vmem:[#allocation4 + $0x48] sm:$0xff]
        %v382 = vld [vmem:[#allocation4 + $0x50] sm:$0xff]
        %v383 = vld [vmem:[#allocation4 + $0x58] sm:$0xff]
        %v384 = vld [vmem:[#allocation4 + $0x60] sm:$0xff]
        %v385 = vld [vmem:[#allocation4 + $0x68] sm:$0xff]
        %v386 = vld [vmem:[#allocation4 + $0x70] sm:$0xff]
        %v387 = vld [vmem:[#allocation4 + $0x78] sm:$0xff]
        %v388 = vld [vmem:[#allocation4 + $0x80] sm:$0xff]
        %v389 = vld [vmem:[#allocation4 + $0x88] sm:$0xff]
        %v390 = vld [vmem:[#allocation4 + $0x90] sm:$0xff]
        %v391 = vld [vmem:[#allocation4 + $0x98] sm:$0xff]
        %v392 = vld [vmem:[#allocation4 + $0xa0] sm:$0xff]
        %v393 = vld [vmem:[#allocation4 + $0xa8] sm:$0xff]
        %v394 = vld [vmem:[#allocation4 + $0xb0] sm:$0xff]
        %v395 = vld [vmem:[#allocation4 + $0xb8] sm:$0xff]
        %v396 = vld [vmem:[#allocation4 + $0xc0] sm:$0xff]
        %v397 = vld [vmem:[#allocation4 + $0xc8] sm:$0xff]
        %v398 = vld [vmem:[#allocation4 + $0xd0] sm:$0xff]
        %v399 = vld [vmem:[#allocation4 + $0xd8] sm:$0xff]
        %v400 = vld [vmem:[#allocation4 + $0xe0] sm:$0xff]
        %v401 = vld [vmem:[#allocation4 + $0xe8] sm:$0xff]
        %v402 = vld [vmem:[#allocation4 + $0xf0] sm:$0xff]
        %v403 = vld [vmem:[#allocation4 + $0xf8] sm:$0xff]
        %v404 = vld [vmem:[#allocation4 + $0x100] sm:$0xff]
        %v405 = vld [vmem:[#allocation4 + $0x108] sm:$0xff]
        %v406 = vld [vmem:[#allocation4 + $0x110] sm:$0xff]
        %v407 = vld [vmem:[#allocation4 + $0x118] sm:$0xff]
        %v408 = vld [vmem:[#allocation4 + $0x120] sm:$0xff]
        %v409 = vld [vmem:[#allocation4 + $0x128] sm:$0xff]
        %v410 = vld [vmem:[#allocation4 + $0x130] sm:$0xff]
        %v411 = vld [vmem:[#allocation4 + $0x138] sm:$0xff]
        %v412 = vld [vmem:[#allocation4 + $0x140] sm:$0xff]
        %v413 = vld [vmem:[#allocation4 + $0x148] sm:$0xff]
        %v414 = vld [vmem:[#allocation4 + $0x150] sm:$0xff]
        %v415 = vld [vmem:[#allocation4 + $0x158] sm:$0xff]
        %v416 = vld [vmem:[#allocation4 + $0x160] sm:$0xff]
        %v417 = vld [vmem:[#allocation4 + $0x168] sm:$0xff]
        %v418 = vld [vmem:[#allocation4 + $0x170] sm:$0xff]
        %v419 = vld [vmem:[#allocation4 + $0x178] sm:$0xff]
        %v420 = vld [vmem:[#allocation4 + $0x180] sm:$0xff]
        %v421 = vld [vmem:[#allocation4 + $0x188] sm:$0xff]
        %v422 = vld [vmem:[#allocation4 + $0x190] sm:$0xff]
        %v423 = vld [vmem:[#allocation4 + $0x198] sm:$0xff]
        %v424 = vld [vmem:[#allocation4 + $0x1a0] sm:$0xff]
        %v425 = vld [vmem:[#allocation4 + $0x1a8] sm:$0xff]
        %v426 = vld [vmem:[#allocation4 + $0x1b0] sm:$0xff]
        %v427 = vld [vmem:[#allocation4 + $0x1b8] sm:$0xff]
        %v428 = vld [vmem:[#allocation4 + $0x1c0] sm:$0xff]
        %v429 = vld [vmem:[#allocation4 + $0x1c8] sm:$0xff]
        %v430 = vld [vmem:[#allocation4 + $0x1d0] sm:$0xff]
        %v431 = vld [vmem:[#allocation4 + $0x1d8] sm:$0xff]
        %v432 = vld [vmem:[#allocation4 + $0x1e0] sm:$0xff]
        %v433 = vld [vmem:[#allocation4 + $0x1e8] sm:$0xff]
        %v434 = vld [vmem:[#allocation4 + $0x1f0] sm:$0xff]
        %v435 = vld [vmem:[#allocation4 + $0x1f8] sm:$0xff]
        %v436 = vld [vmem:[#allocation4 + $0x200] sm:$0xff]
        %v437 = vld [vmem:[#allocation4 + $0x208] sm:$0xff]
        %v438 = vld [vmem:[#allocation4 + $0x210] sm:$0xff]
        %v439 = vld [vmem:[#allocation4 + $0x218] sm:$0xff]
        %v440 = vld [vmem:[#allocation4 + $0x220] sm:$0xff]
        %v441 = vld [vmem:[#allocation4 + $0x228] sm:$0xff]
        %v442 = vld [vmem:[#allocation4 + $0x230] sm:$0xff]
        %v443 = vld [vmem:[#allocation4 + $0x238] sm:$0xff]
        %v444 = vld [vmem:[#allocation4 + $0x240] sm:$0xff]
        %v445 = vld [vmem:[#allocation4 + $0x248] sm:$0xff]
        %v446 = vld [vmem:[#allocation4 + $0x250] sm:$0xff]
        %v447 = vld [vmem:[#allocation4 + $0x258] sm:$0xff]
        %v448 = vld [vmem:[#allocation4 + $0x260] sm:$0xff]
        %v449 = vld [vmem:[#allocation4 + $0x268] sm:$0xff]
        %v450 = vld [vmem:[#allocation4 + $0x270] sm:$0xff]
        %v451 = vld [vmem:[#allocation4 + $0x278] sm:$0xff]
        %v452 = vld [vmem:[#allocation4 + $0x280] sm:$0xff]
        %v453 = vld [vmem:[#allocation4 + $0x288] sm:$0xff]
        %v454 = vld [vmem:[#allocation4 + $0x290] sm:$0xff]
        %v455 = vld [vmem:[#allocation4 + $0x298] sm:$0xff]
        %v456 = vld [vmem:[#allocation4 + $0x2a0] sm:$0xff]
        %v457 = vld [vmem:[#allocation4 + $0x2a8] sm:$0xff]
        %v458 = vld [vmem:[#allocation4 + $0x2b0] sm:$0xff]
        %v459 = vld [vmem:[#allocation4 + $0x2b8] sm:$0xff]
        %v460 = vld [vmem:[#allocation4 + $0x2c0] sm:$0xff]
        %v461 = vld [vmem:[#allocation4 + $0x2c8] sm:$0xff]
        %v462 = vld [vmem:[#allocation4 + $0x2d0] sm:$0xff]
        %v463 = vld [vmem:[#allocation4 + $0x2d8] sm:$0xff]
        %v464 = vld [vmem:[#allocation4 + $0x2e0] sm:$0xff]
        %v465 = vld [vmem:[#allocation4 + $0x2e8] sm:$0xff]
        %v466 = vld [vmem:[#allocation4 + $0x2f0] sm:$0xff]
        %v467 = vld [vmem:[#allocation4 + $0x2f8] sm:$0xff]
        %v468 = vld [vmem:[#allocation4 + $0x300] sm:$0xff]
        %v469 = vld [vmem:[#allocation4 + $0x308] sm:$0xff]
        %v470 = vld [vmem:[#allocation4 + $0x310] sm:$0xff]
        %v471 = vld [vmem:[#allocation4 + $0x318] sm:$0xff]
        %v472 = vld [vmem:[#allocation4 + $0x320] sm:$0xff]
        %v473 = vld [vmem:[#allocation4 + $0x328] sm:$0xff]
        %v474 = vld [vmem:[#allocation4 + $0x330] sm:$0xff]
        %v475 = vld [vmem:[#allocation4 + $0x338] sm:$0xff]
        %v476 = vld [vmem:[#allocation4 + $0x340] sm:$0xff]
        %v477 = vld [vmem:[#allocation4 + $0x348] sm:$0xff]
        %v478 = vld [vmem:[#allocation4 + $0x350] sm:$0xff]
        %v479 = vld [vmem:[#allocation4 + $0x358] sm:$0xff]
        %v480 = vld [vmem:[#allocation4 + $0x360] sm:$0xff]
        %v481 = vld [vmem:[#allocation4 + $0x368] sm:$0xff]
        %v482 = vld [vmem:[#allocation4 + $0x370] sm:$0xff]
        %v483 = vld [vmem:[#allocation4 + $0x378] sm:$0xff]
        %v484 = vld [vmem:[#allocation4 + $0x380] sm:$0xff]
        %v485 = vld [vmem:[#allocation4 + $0x388] sm:$0xff]
        %v486 = vld [vmem:[#allocation4 + $0x390] sm:$0xff]
        %v487 = vld [vmem:[#allocation4 + $0x398] sm:$0xff]
        %v488 = vld [vmem:[#allocation4 + $0x3a0] sm:$0xff]
        %v489 = vld [vmem:[#allocation4 + $0x3a8] sm:$0xff]
        %v490 = vld [vmem:[#allocation4 + $0x3b0] sm:$0xff]
        %v491 = vld [vmem:[#allocation4 + $0x3b8] sm:$0xff]
        %v492 = vld [vmem:[#allocation4 + $0x3c0] sm:$0xff]
        %v493 = vld [vmem:[#allocation4 + $0x3c8] sm:$0xff]
        %v494 = vld [vmem:[#allocation4 + $0x3d0] sm:$0xff]
        %v495 = vld [vmem:[#allocation4 + $0x3d8] sm:$0xff]
        %v496 = vld [vmem:[#allocation4 + $0x3e0] sm:$0xff]
        %v497 = vld [vmem:[#allocation4 + $0x3e8] sm:$0xff]
        %v498 = vld [vmem:[#allocation4 + $0x3f0] sm:$0xff]
        %v499 = vld [vmem:[#allocation4 + $0x3f8] sm:$0xff]
        %v500 = vld [vmem:[%s2] sm:$0xf]
        %v502 = vlaneseq
        %v503 = vshrl.u32 %v502, 7
        %v504 = vsub.s32 0, %v503
        %v505 = vrot.slane %v500, %v504
        %v506 = vlaneseq
        %v507 = vshrl.u32 %v506, 7
        %v508 = vsub.s32 1, %v507
        %v509 = vrot.slane %v500, %v508
        %v510 = vlaneseq
        %v511 = vshrl.u32 %v510, 7
        %v512 = vsub.s32 2, %v511
        %v513 = vrot.slane %v500, %v512
        %v514 = vlaneseq
        %v515 = vshrl.u32 %v514, 7
        %v516 = vsub.s32 3, %v515
        %v517 = vrot.slane %v500, %v516
        %v650 = vunpack.c.l.b16 %v372
        %v651 = vunpack.c.h.b16 %v372
        %v652 = vunpack.c.l.b16 %v373
        %v653 = vunpack.c.h.b16 %v373
        %v654 = vunpack.c.l.b16 %v374
        %v655 = vunpack.c.h.b16 %v374
        %v656 = vunpack.c.l.b16 %v375
        %v657 = vunpack.c.h.b16 %v375
        %v658 = vunpack.c.l.b16 %v376
        %v659 = vunpack.c.h.b16 %v376
        %v660 = vunpack.c.l.b16 %v377
        %v661 = vunpack.c.h.b16 %v377
        %v662 = vunpack.c.l.b16 %v378
        %v663 = vunpack.c.h.b16 %v378
        %v664 = vunpack.c.l.b16 %v379
        %v665 = vunpack.c.h.b16 %v379
        %v666 = vunpack.c.l.b16 %v380
        %v667 = vunpack.c.h.b16 %v380
        %v668 = vunpack.c.l.b16 %v381
        %v669 = vunpack.c.h.b16 %v381
        %v670 = vunpack.c.l.b16 %v382
        %v671 = vunpack.c.h.b16 %v382
        %v672 = vunpack.c.l.b16 %v383
        %v673 = vunpack.c.h.b16 %v383
        %v674 = vunpack.c.l.b16 %v384
        %v675 = vunpack.c.h.b16 %v384
        %v676 = vunpack.c.l.b16 %v385
        %v677 = vunpack.c.h.b16 %v385
        %v678 = vunpack.c.l.b16 %v386
        %v679 = vunpack.c.h.b16 %v386
        %v680 = vunpack.c.l.b16 %v387
        %v681 = vunpack.c.h.b16 %v387
        %v682 = vunpack.c.l.b16 %v388
        %v683 = vunpack.c.h.b16 %v388
        %v684 = vunpack.c.l.b16 %v389
        %v685 = vunpack.c.h.b16 %v389
        %v686 = vunpack.c.l.b16 %v390
        %v687 = vunpack.c.h.b16 %v390
        %v688 = vunpack.c.l.b16 %v391
        %v689 = vunpack.c.h.b16 %v391
        %v690 = vunpack.c.l.b16 %v392
        %v691 = vunpack.c.h.b16 %v392
        %v692 = vunpack.c.l.b16 %v393
        %v693 = vunpack.c.h.b16 %v393
        %v694 = vunpack.c.l.b16 %v394
        %v695 = vunpack.c.h.b16 %v394
        %v696 = vunpack.c.l.b16 %v395
        %v697 = vunpack.c.h.b16 %v395
        %v698 = vunpack.c.l.b16 %v396
        %v699 = vunpack.c.h.b16 %v396
        %v700 = vunpack.c.l.b16 %v397
        %v701 = vunpack.c.h.b16 %v397
        %v702 = vunpack.c.l.b16 %v398
        %v703 = vunpack.c.h.b16 %v398
        %v704 = vunpack.c.l.b16 %v399
        %v705 = vunpack.c.h.b16 %v399
        %v706 = vunpack.c.l.b16 %v400
        %v707 = vunpack.c.h.b16 %v400
        %v708 = vunpack.c.l.b16 %v401
        %v709 = vunpack.c.h.b16 %v401
        %v710 = vunpack.c.l.b16 %v402
        %v711 = vunpack.c.h.b16 %v402
        %v712 = vunpack.c.l.b16 %v403
        %v713 = vunpack.c.h.b16 %v403
        %v714 = vunpack.c.l.b16 %v404
        %v715 = vunpack.c.h.b16 %v404
        %v716 = vunpack.c.l.b16 %v405
        %v717 = vunpack.c.h.b16 %v405
        %v718 = vunpack.c.l.b16 %v406
        %v719 = vunpack.c.h.b16 %v406
        %v720 = vunpack.c.l.b16 %v407
        %v721 = vunpack.c.h.b16 %v407
        %v722 = vunpack.c.l.b16 %v408
        %v723 = vunpack.c.h.b16 %v408
        %v724 = vunpack.c.l.b16 %v409
        %v725 = vunpack.c.h.b16 %v409
        %v726 = vunpack.c.l.b16 %v410
        %v727 = vunpack.c.h.b16 %v410
        %v728 = vunpack.c.l.b16 %v411
        %v729 = vunpack.c.h.b16 %v411
        %v730 = vunpack.c.l.b16 %v412
        %v731 = vunpack.c.h.b16 %v412
        %v732 = vunpack.c.l.b16 %v413
        %v733 = vunpack.c.h.b16 %v413
        %v734 = vunpack.c.l.b16 %v414
        %v735 = vunpack.c.h.b16 %v414
        %v736 = vunpack.c.l.b16 %v415
        %v737 = vunpack.c.h.b16 %v415
        %v738 = vunpack.c.l.b16 %v416
        %v739 = vunpack.c.h.b16 %v416
        %v740 = vunpack.c.l.b16 %v417
        %v741 = vunpack.c.h.b16 %v417
        %v742 = vunpack.c.l.b16 %v418
        %v743 = vunpack.c.h.b16 %v418
        %v744 = vunpack.c.l.b16 %v419
        %v745 = vunpack.c.h.b16 %v419
        %v746 = vunpack.c.l.b16 %v420
        %v747 = vunpack.c.h.b16 %v420
        %v748 = vunpack.c.l.b16 %v421
        %v749 = vunpack.c.h.b16 %v421
        %v750 = vunpack.c.l.b16 %v422
        %v751 = vunpack.c.h.b16 %v422
        %v752 = vunpack.c.l.b16 %v423
        %v753 = vunpack.c.h.b16 %v423
        %v754 = vunpack.c.l.b16 %v424
        %v755 = vunpack.c.h.b16 %v424
        %v756 = vunpack.c.l.b16 %v425
        %v757 = vunpack.c.h.b16 %v425
        %v758 = vunpack.c.l.b16 %v426
        %v759 = vunpack.c.h.b16 %v426
        %v760 = vunpack.c.l.b16 %v427
        %v761 = vunpack.c.h.b16 %v427
        %v762 = vunpack.c.l.b16 %v428
        %v763 = vunpack.c.h.b16 %v428
        %v764 = vunpack.c.l.b16 %v429
        %v765 = vunpack.c.h.b16 %v429
        %v766 = vunpack.c.l.b16 %v430
        %v767 = vunpack.c.h.b16 %v430
        %v768 = vunpack.c.l.b16 %v431
        %v769 = vunpack.c.h.b16 %v431
        %v770 = vunpack.c.l.b16 %v432
        %v771 = vunpack.c.h.b16 %v432
        %v772 = vunpack.c.l.b16 %v433
        %v773 = vunpack.c.h.b16 %v433
        %v774 = vunpack.c.l.b16 %v434
        %v775 = vunpack.c.h.b16 %v434
        %v776 = vunpack.c.l.b16 %v435
        %v777 = vunpack.c.h.b16 %v435
        %v778 = vunpack.c.l.b16 %v436
        %v779 = vunpack.c.h.b16 %v436
        %v780 = vunpack.c.l.b16 %v437
        %v781 = vunpack.c.h.b16 %v437
        %v782 = vunpack.c.l.b16 %v438
        %v783 = vunpack.c.h.b16 %v438
        %v784 = vunpack.c.l.b16 %v439
        %v785 = vunpack.c.h.b16 %v439
        %v786 = vunpack.c.l.b16 %v440
        %v787 = vunpack.c.h.b16 %v440
        %v788 = vunpack.c.l.b16 %v441
        %v789 = vunpack.c.h.b16 %v441
        %v790 = vunpack.c.l.b16 %v442
        %v791 = vunpack.c.h.b16 %v442
        %v792 = vunpack.c.l.b16 %v443
        %v793 = vunpack.c.h.b16 %v443
        %v794 = vunpack.c.l.b16 %v444
        %v795 = vunpack.c.h.b16 %v444
        %v796 = vunpack.c.l.b16 %v445
        %v797 = vunpack.c.h.b16 %v445
        %v798 = vunpack.c.l.b16 %v446
        %v799 = vunpack.c.h.b16 %v446
        %v800 = vunpack.c.l.b16 %v447
        %v801 = vunpack.c.h.b16 %v447
        %v802 = vunpack.c.l.b16 %v448
        %v803 = vunpack.c.h.b16 %v448
        %v804 = vunpack.c.l.b16 %v449
        %v805 = vunpack.c.h.b16 %v449
        %v806 = vunpack.c.l.b16 %v450
        %v807 = vunpack.c.h.b16 %v450
        %v808 = vunpack.c.l.b16 %v451
        %v809 = vunpack.c.h.b16 %v451
        %v810 = vunpack.c.l.b16 %v452
        %v811 = vunpack.c.h.b16 %v452
        %v812 = vunpack.c.l.b16 %v453
        %v813 = vunpack.c.h.b16 %v453
        %v814 = vunpack.c.l.b16 %v454
        %v815 = vunpack.c.h.b16 %v454
        %v816 = vunpack.c.l.b16 %v455
        %v817 = vunpack.c.h.b16 %v455
        %v818 = vunpack.c.l.b16 %v456
        %v819 = vunpack.c.h.b16 %v456
        %v820 = vunpack.c.l.b16 %v457
        %v821 = vunpack.c.h.b16 %v457
        %v822 = vunpack.c.l.b16 %v458
        %v823 = vunpack.c.h.b16 %v458
        %v824 = vunpack.c.l.b16 %v459
        %v825 = vunpack.c.h.b16 %v459
        %v826 = vunpack.c.l.b16 %v460
        %v827 = vunpack.c.h.b16 %v460
        %v828 = vunpack.c.l.b16 %v461
        %v829 = vunpack.c.h.b16 %v461
        %v830 = vunpack.c.l.b16 %v462
        %v831 = vunpack.c.h.b16 %v462
        %v832 = vunpack.c.l.b16 %v463
        %v833 = vunpack.c.h.b16 %v463
        %v834 = vunpack.c.l.b16 %v464
        %v835 = vunpack.c.h.b16 %v464
        %v836 = vunpack.c.l.b16 %v465
        %v837 = vunpack.c.h.b16 %v465
        %v838 = vunpack.c.l.b16 %v466
        %v839 = vunpack.c.h.b16 %v466
        %v840 = vunpack.c.l.b16 %v467
        %v841 = vunpack.c.h.b16 %v467
        %v842 = vunpack.c.l.b16 %v468
        %v843 = vunpack.c.h.b16 %v468
        %v844 = vunpack.c.l.b16 %v469
        %v845 = vunpack.c.h.b16 %v469
        %v846 = vunpack.c.l.b16 %v470
        %v847 = vunpack.c.h.b16 %v470
        %v848 = vunpack.c.l.b16 %v471
        %v849 = vunpack.c.h.b16 %v471
        %v850 = vunpack.c.l.b16 %v472
        %v851 = vunpack.c.h.b16 %v472
        %v852 = vunpack.c.l.b16 %v473
        %v853 = vunpack.c.h.b16 %v473
        %v854 = vunpack.c.l.b16 %v474
        %v855 = vunpack.c.h.b16 %v474
        %v856 = vunpack.c.l.b16 %v475
        %v857 = vunpack.c.h.b16 %v475
        %v858 = vunpack.c.l.b16 %v476
        %v859 = vunpack.c.h.b16 %v476
        %v860 = vunpack.c.l.b16 %v477
        %v861 = vunpack.c.h.b16 %v477
        %v862 = vunpack.c.l.b16 %v478
        %v863 = vunpack.c.h.b16 %v478
        %v864 = vunpack.c.l.b16 %v479
        %v865 = vunpack.c.h.b16 %v479
        %v866 = vunpack.c.l.b16 %v480
        %v867 = vunpack.c.h.b16 %v480
        %v868 = vunpack.c.l.b16 %v481
        %v869 = vunpack.c.h.b16 %v481
        %v870 = vunpack.c.l.b16 %v482
        %v871 = vunpack.c.h.b16 %v482
        %v872 = vunpack.c.l.b16 %v483
        %v873 = vunpack.c.h.b16 %v483
        %v874 = vunpack.c.l.b16 %v484
        %v875 = vunpack.c.h.b16 %v484
        %v876 = vunpack.c.l.b16 %v485
        %v877 = vunpack.c.h.b16 %v485
        %v878 = vunpack.c.l.b16 %v486
        %v879 = vunpack.c.h.b16 %v486
        %v880 = vunpack.c.l.b16 %v487
        %v881 = vunpack.c.h.b16 %v487
        %v882 = vunpack.c.l.b16 %v488
        %v883 = vunpack.c.h.b16 %v488
        %v884 = vunpack.c.l.b16 %v489
        %v885 = vunpack.c.h.b16 %v489
        %v886 = vunpack.c.l.b16 %v490
        %v887 = vunpack.c.h.b16 %v490
        %v888 = vunpack.c.l.b16 %v491
        %v889 = vunpack.c.h.b16 %v491
        %v890 = vunpack.c.l.b16 %v492
        %v891 = vunpack.c.h.b16 %v492
        %v892 = vunpack.c.l.b16 %v493
        %v893 = vunpack.c.h.b16 %v493
        %v894 = vunpack.c.l.b16 %v494
        %v895 = vunpack.c.h.b16 %v494
        %v896 = vunpack.c.l.b16 %v495
        %v897 = vunpack.c.h.b16 %v495
        %v898 = vunpack.c.l.b16 %v496
        %v899 = vunpack.c.h.b16 %v496
        %v900 = vunpack.c.l.b16 %v497
        %v901 = vunpack.c.h.b16 %v497
        %v902 = vunpack.c.l.b16 %v498
        %v903 = vunpack.c.h.b16 %v498
        %v904 = vunpack.c.l.b16 %v499
        %v905 = vunpack.c.h.b16 %v499
        %v906 = vpack.c.b16 %v654, %v650
        %v907 = vpack.c.b16 %v655, %v651
        %v908 = vpack.c.b16 %v656, %v652
        %v909 = vpack.c.b16 %v657, %v653
        %v910 = vpack.c.b16 %v662, %v658
        %v911 = vpack.c.b16 %v663, %v659
        %v912 = vpack.c.b16 %v664, %v660
        %v913 = vpack.c.b16 %v665, %v661
        %v914 = vpack.c.b16 %v670, %v666
        %v915 = vpack.c.b16 %v671, %v667
        %v916 = vpack.c.b16 %v672, %v668
        %v917 = vpack.c.b16 %v673, %v669
        %v918 = vpack.c.b16 %v678, %v674
        %v919 = vpack.c.b16 %v679, %v675
        %v920 = vpack.c.b16 %v680, %v676
        %v921 = vpack.c.b16 %v681, %v677
        %v922 = vpack.c.b16 %v686, %v682
        %v923 = vpack.c.b16 %v687, %v683
        %v924 = vpack.c.b16 %v688, %v684
        %v925 = vpack.c.b16 %v689, %v685
        %v926 = vpack.c.b16 %v694, %v690
        %v927 = vpack.c.b16 %v695, %v691
        %v928 = vpack.c.b16 %v696, %v692
        %v929 = vpack.c.b16 %v697, %v693
        %v930 = vpack.c.b16 %v702, %v698
        %v931 = vpack.c.b16 %v703, %v699
        %v932 = vpack.c.b16 %v704, %v700
        %v933 = vpack.c.b16 %v705, %v701
        %v934 = vpack.c.b16 %v710, %v706
        %v935 = vpack.c.b16 %v711, %v707
        %v936 = vpack.c.b16 %v712, %v708
        %v937 = vpack.c.b16 %v713, %v709
        %v938 = vpack.c.b16 %v718, %v714
        %v939 = vpack.c.b16 %v719, %v715
        %v940 = vpack.c.b16 %v720, %v716
        %v941 = vpack.c.b16 %v721, %v717
        %v942 = vpack.c.b16 %v726, %v722
        %v943 = vpack.c.b16 %v727, %v723
        %v944 = vpack.c.b16 %v728, %v724
        %v945 = vpack.c.b16 %v729, %v725
        %v946 = vpack.c.b16 %v734, %v730
        %v947 = vpack.c.b16 %v735, %v731
        %v948 = vpack.c.b16 %v736, %v732
        %v949 = vpack.c.b16 %v737, %v733
        %v950 = vpack.c.b16 %v742, %v738
        %v951 = vpack.c.b16 %v743, %v739
        %v952 = vpack.c.b16 %v744, %v740
        %v953 = vpack.c.b16 %v745, %v741
        %v954 = vpack.c.b16 %v750, %v746
        %v955 = vpack.c.b16 %v751, %v747
        %v956 = vpack.c.b16 %v752, %v748
        %v957 = vpack.c.b16 %v753, %v749
        %v958 = vpack.c.b16 %v758, %v754
        %v959 = vpack.c.b16 %v759, %v755
        %v960 = vpack.c.b16 %v760, %v756
        %v961 = vpack.c.b16 %v761, %v757
        %v962 = vpack.c.b16 %v766, %v762
        %v963 = vpack.c.b16 %v767, %v763
        %v964 = vpack.c.b16 %v768, %v764
        %v965 = vpack.c.b16 %v769, %v765
        %v966 = vpack.c.b16 %v774, %v770
        %v967 = vpack.c.b16 %v775, %v771
        %v968 = vpack.c.b16 %v776, %v772
        %v969 = vpack.c.b16 %v777, %v773
        %v970 = vpack.c.b16 %v782, %v778
        %v971 = vpack.c.b16 %v783, %v779
        %v972 = vpack.c.b16 %v784, %v780
        %v973 = vpack.c.b16 %v785, %v781
        %v974 = vpack.c.b16 %v790, %v786
        %v975 = vpack.c.b16 %v791, %v787
        %v976 = vpack.c.b16 %v792, %v788
        %v977 = vpack.c.b16 %v793, %v789
        %v978 = vpack.c.b16 %v798, %v794
        %v979 = vpack.c.b16 %v799, %v795
        %v980 = vpack.c.b16 %v800, %v796
        %v981 = vpack.c.b16 %v801, %v797
        %v982 = vpack.c.b16 %v806, %v802
        %v983 = vpack.c.b16 %v807, %v803
        %v984 = vpack.c.b16 %v808, %v804
        %v985 = vpack.c.b16 %v809, %v805
        %v986 = vpack.c.b16 %v814, %v810
        %v987 = vpack.c.b16 %v815, %v811
        %v988 = vpack.c.b16 %v816, %v812
        %v989 = vpack.c.b16 %v817, %v813
        %v990 = vpack.c.b16 %v822, %v818
        %v991 = vpack.c.b16 %v823, %v819
        %v992 = vpack.c.b16 %v824, %v820
        %v993 = vpack.c.b16 %v825, %v821
        %v994 = vpack.c.b16 %v830, %v826
        %v995 = vpack.c.b16 %v831, %v827
        %v996 = vpack.c.b16 %v832, %v828
        %v997 = vpack.c.b16 %v833, %v829
        %v998 = vpack.c.b16 %v838, %v834
        %v999 = vpack.c.b16 %v839, %v835
        %v1000 = vpack.c.b16 %v840, %v836
        %v1001 = vpack.c.b16 %v841, %v837
        %v1002 = vpack.c.b16 %v846, %v842
        %v1003 = vpack.c.b16 %v847, %v843
        %v1004 = vpack.c.b16 %v848, %v844
        %v1005 = vpack.c.b16 %v849, %v845
        %v1006 = vpack.c.b16 %v854, %v850
        %v1007 = vpack.c.b16 %v855, %v851
        %v1008 = vpack.c.b16 %v856, %v852
        %v1009 = vpack.c.b16 %v857, %v853
        %v1010 = vpack.c.b16 %v862, %v858
        %v1011 = vpack.c.b16 %v863, %v859
        %v1012 = vpack.c.b16 %v864, %v860
        %v1013 = vpack.c.b16 %v865, %v861
        %v1014 = vpack.c.b16 %v870, %v866
        %v1015 = vpack.c.b16 %v871, %v867
        %v1016 = vpack.c.b16 %v872, %v868
        %v1017 = vpack.c.b16 %v873, %v869
        %v1018 = vpack.c.b16 %v878, %v874
        %v1019 = vpack.c.b16 %v879, %v875
        %v1020 = vpack.c.b16 %v880, %v876
        %v1021 = vpack.c.b16 %v881, %v877
        %v1022 = vpack.c.b16 %v886, %v882
        %v1023 = vpack.c.b16 %v887, %v883
        %v1024 = vpack.c.b16 %v888, %v884
        %v1025 = vpack.c.b16 %v889, %v885
        %v1026 = vpack.c.b16 %v894, %v890
        %v1027 = vpack.c.b16 %v895, %v891
        %v1028 = vpack.c.b16 %v896, %v892
        %v1029 = vpack.c.b16 %v897, %v893
        %v1030 = vpack.c.b16 %v902, %v898
        %v1031 = vpack.c.b16 %v903, %v899
        %v1032 = vpack.c.b16 %v904, %v900
        %v1033 = vpack.c.b16 %v905, %v901
        %1162 = vmatprep.subr.bf16.mxu0 %v907
        %1163 = vmatpush1.bf16.msra.mxu0 %v906
        %1164 = vmatprep.subr.bf16.mxu0 %v911
        %1165 = vmatpush1.bf16.msra.mxu0 %v910
        %1166 = vmatprep.subr.bf16.mxu0 %v915
        %1167 = vmatpush1.bf16.msra.mxu0 %v914
        %1168 = vmatprep.subr.bf16.mxu0 %v919
        %1169 = vmatpush1.bf16.msra.mxu0 %v918
        %1170 = vmatprep.subr.bf16.mxu0 %v923
        %1171 = vmatpush1.bf16.msra.mxu0 %v922
        %1172 = vmatprep.subr.bf16.mxu0 %v927
        %1173 = vmatpush1.bf16.msra.mxu0 %v926
        %1174 = vmatprep.subr.bf16.mxu0 %v931
        %1175 = vmatpush1.bf16.msra.mxu0 %v930
        %1176 = vmatprep.subr.bf16.mxu0 %v935
        %1177 = vmatpush1.bf16.msra.mxu0 %v934
        %1178 = vmatprep.subr.bf16.mxu0 %v939
        %1179 = vmatpush1.bf16.msra.mxu0 %v938
        %1180 = vmatprep.subr.bf16.mxu0 %v943
        %1181 = vmatpush1.bf16.msra.mxu0 %v942
        %1182 = vmatprep.subr.bf16.mxu0 %v947
        %1183 = vmatpush1.bf16.msra.mxu0 %v946
        %1184 = vmatprep.subr.bf16.mxu0 %v951
        %1185 = vmatpush1.bf16.msra.mxu0 %v950
        %1186 = vmatprep.subr.bf16.mxu0 %v955
        %1187 = vmatpush1.bf16.msra.mxu0 %v954
        %1188 = vmatprep.subr.bf16.mxu0 %v959
        %1189 = vmatpush1.bf16.msra.mxu0 %v958
        %1190 = vmatprep.subr.bf16.mxu0 %v963
        %1191 = vmatpush1.bf16.msra.mxu0 %v962
        %1192 = vmatprep.subr.bf16.mxu0 %v967
        %1193 = vmatpush1.bf16.msra.mxu0 %v966
        %1194 = vmatprep.mubr.bf16.mxu0 %v345
        %1195 = vmatmul.mubr.bf16.gmra.mrb[0].mxu0 %v344
        %v1196 = vpop.f32.mrb[0].mxu0
        %v1197 = vadd.f32 %v505, %v1196
        %v1198 = vpop.f32.mrb[0].mxu0
        %v1199 = vadd.f32 %v509, %v1198
        %v1200 = vpop.f32.mrb[0].mxu0
        %v1201 = vadd.f32 %v505, %v1200
        %v1202 = vpop.f32.mrb[0].mxu0
        %v1203 = vadd.f32 %v509, %v1202
        %1204 = vmatprep.mubr.bf16.mxu0 %v349
        %1205 = vmatmul.mubr.bf16.gmra.mrb[0].mxu0 %v348
        %v1206 = vpop.f32.mrb[0].mxu0
        %v1207 = vadd.f32 %v505, %v1206
        %v1208 = vpop.f32.mrb[0].mxu0
        %v1209 = vadd.f32 %v509, %v1208
        %v1210 = vpop.f32.mrb[0].mxu0
        %v1211 = vadd.f32 %v505, %v1210
        %v1212 = vpop.f32.mrb[0].mxu0
        %v1213 = vadd.f32 %v509, %v1212
        %1214 = vmatprep.mubr.bf16.mxu0 %v353
        %1215 = vmatmul.mubr.bf16.gmra.mrb[0].mxu0 %v352
        %v1216 = vpop.f32.mrb[0].mxu0
        %v1217 = vadd.f32 %v505, %v1216
        %v1218 = vpop.f32.mrb[0].mxu0
        %v1219 = vadd.f32 %v509, %v1218
        %v1220 = vpop.f32.mrb[0].mxu0
        %v1221 = vadd.f32 %v505, %v1220
        %v1222 = vpop.f32.mrb[0].mxu0
        %v1223 = vadd.f32 %v509, %v1222
        %1224 = vmatprep.mubr.bf16.mxu0 %v357
        %1225 = vmatmul.mubr.bf16.gmra.mrb[0].mxu0 %v356
        %v1226 = vpop.f32.mrb[0].mxu0
        %v1227 = vadd.f32 %v505, %v1226
        %v1228 = vpop.f32.mrb[0].mxu0
        %v1229 = vadd.f32 %v509, %v1228
        %v1230 = vpop.f32.mrb[0].mxu0
        %v1231 = vadd.f32 %v505, %v1230
        %v1232 = vpop.f32.mrb[0].mxu0
        %v1233 = vadd.f32 %v509, %v1232
        %1234 = vmatprep.mubr.bf16.mxu0 %v361
        %1235 = vmatmul.mubr.bf16.gmra.mrb[0].mxu0 %v360
        %v1236 = vpop.f32.mrb[0].mxu0
        %v1237 = vadd.f32 %v505, %v1236
        %v1238 = vpop.f32.mrb[0].mxu0
        %v1239 = vadd.f32 %v509, %v1238
        %v1240 = vpop.f32.mrb[0].mxu0
        %v1241 = vadd.f32 %v505, %v1240
        %v1242 = vpop.f32.mrb[0].mxu0
        %v1243 = vadd.f32 %v509, %v1242
        %1244 = vmatprep.mubr.bf16.mxu0 %v365
        %1245 = vmatmul.mubr.bf16.gmra.mrb[0].mxu0 %v364
        %v1246 = vpop.f32.mrb[0].mxu0
        %v1247 = vadd.f32 %v505, %v1246
        %v1248 = vpop.f32.mrb[0].mxu0
        %v1249 = vadd.f32 %v509, %v1248
        %v1250 = vpop.f32.mrb[0].mxu0
        %v1251 = vadd.f32 %v505, %v1250
        %v1252 = vpop.f32.mrb[0].mxu0
        %v1253 = vadd.f32 %v509, %v1252
        %1254 = vmatprep.mubr.bf16.mxu0 %v369
        %1255 = vmatmul.mubr.bf16.gmra.mrb[0].mxu0 %v368
        %v1256 = vpop.f32.mrb[0].mxu0
        %v1257 = vadd.f32 %v505, %v1256
        %v1258 = vpop.f32.mrb[0].mxu0
        %v1259 = vadd.f32 %v509, %v1258
        %v1260 = vpop.f32.mrb[0].mxu0
        %v1261 = vadd.f32 %v505, %v1260
        %v1262 = vpop.f32.mrb[0].mxu0
        %v1263 = vadd.f32 %v509, %v1262
        %1264 = vdwg.mxu0
        %1265 = vmatprep.subr.bf16.mxu0 %v971
        %1266 = vmatpush1.bf16.msra.mxu0 %v970
        %1267 = vmatprep.subr.bf16.mxu0 %v975
        %1268 = vmatpush1.bf16.msra.mxu0 %v974
        %1269 = vmatprep.subr.bf16.mxu0 %v979
        %1270 = vmatpush1.bf16.msra.mxu0 %v978
        %1271 = vmatprep.subr.bf16.mxu0 %v983
        %1272 = vmatpush1.bf16.msra.mxu0 %v982
        %1273 = vmatprep.subr.bf16.mxu0 %v987
        %1274 = vmatpush1.bf16.msra.mxu0 %v986
        %1275 = vmatprep.subr.bf16.mxu0 %v991
        %1276 = vmatpush1.bf16.msra.mxu0 %v990
        %1277 = vmatprep.subr.bf16.mxu0 %v995
        %1278 = vmatpush1.bf16.msra.mxu0 %v994
        %1279 = vmatprep.subr.bf16.mxu0 %v999
        %1280 = vmatpush1.bf16.msra.mxu0 %v998
        %1281 = vmatprep.subr.bf16.mxu0 %v1003
        %1282 = vmatpush1.bf16.msra.mxu0 %v1002
        %1283 = vmatprep.subr.bf16.mxu0 %v1007
        %1284 = vmatpush1.bf16.msra.mxu0 %v1006
        %1285 = vmatprep.subr.bf16.mxu0 %v1011
        %1286 = vmatpush1.bf16.msra.mxu0 %v1010
        %1287 = vmatprep.subr.bf16.mxu0 %v1015
        %1288 = vmatpush1.bf16.msra.mxu0 %v1014
        %1289 = vmatprep.subr.bf16.mxu0 %v1019
        %1290 = vmatpush1.bf16.msra.mxu0 %v1018
        %1291 = vmatprep.subr.bf16.mxu0 %v1023
        %1292 = vmatpush1.bf16.msra.mxu0 %v1022
        %1293 = vmatprep.subr.bf16.mxu0 %v1027
        %1294 = vmatpush1.bf16.msra.mxu0 %v1026
        %1295 = vmatprep.subr.bf16.mxu0 %v1031
        %1296 = vmatpush1.bf16.msra.mxu0 %v1030
        %1297 = vmatprep.mubr.bf16.mxu0 %v347
        %1298 = vmatmul.mubr.bf16.gmra.mrb[0].mxu0 %v346
        %v1299 = vpop.f32.mrb[0].mxu0
        %v1300 = vadd.f32 %v1197, %v1299
        %v1301 = vpop.f32.mrb[0].mxu0
        %v1302 = vadd.f32 %v1199, %v1301
        %v1303 = vpop.f32.mrb[0].mxu0
        %v1304 = vadd.f32 %v1201, %v1303
        %v1305 = vpop.f32.mrb[0].mxu0
        %v1306 = vadd.f32 %v1203, %v1305
        %1307 = vmatprep.mubr.bf16.mxu0 %v351
        %1308 = vmatmul.mubr.bf16.gmra.mrb[0].mxu0 %v350
        %v1309 = vpop.f32.mrb[0].mxu0
        %v1310 = vadd.f32 %v1207, %v1309
        %v1311 = vpop.f32.mrb[0].mxu0
        %v1312 = vadd.f32 %v1209, %v1311
        %v1313 = vpop.f32.mrb[0].mxu0
        %v1314 = vadd.f32 %v1211, %v1313
        %v1315 = vpop.f32.mrb[0].mxu0
        %v1316 = vadd.f32 %v1213, %v1315
        %1317 = vmatprep.mubr.bf16.mxu0 %v355
        %1318 = vmatmul.mubr.bf16.gmra.mrb[0].mxu0 %v354
        %v1319 = vpop.f32.mrb[0].mxu0
        %v1320 = vadd.f32 %v1217, %v1319
        %v1321 = vpop.f32.mrb[0].mxu0
        %v1322 = vadd.f32 %v1219, %v1321
        %v1323 = vpop.f32.mrb[0].mxu0
        %v1324 = vadd.f32 %v1221, %v1323
        %v1325 = vpop.f32.mrb[0].mxu0
        %v1326 = vadd.f32 %v1223, %v1325
        %1327 = vmatprep.mubr.bf16.mxu0 %v359
        %1328 = vmatmul.mubr.bf16.gmra.mrb[0].mxu0 %v358
        %v1329 = vpop.f32.mrb[0].mxu0
        %v1330 = vadd.f32 %v1227, %v1329
        %v1331 = vpop.f32.mrb[0].mxu0
        %v1332 = vadd.f32 %v1229, %v1331
        %v1333 = vpop.f32.mrb[0].mxu0
        %v1334 = vadd.f32 %v1231, %v1333
        %v1335 = vpop.f32.mrb[0].mxu0
        %v1336 = vadd.f32 %v1233, %v1335
        %1337 = vmatprep.mubr.bf16.mxu0 %v363
        %1338 = vmatmul.mubr.bf16.gmra.mrb[0].mxu0 %v362
        %v1339 = vpop.f32.mrb[0].mxu0
        %v1340 = vadd.f32 %v1237, %v1339
        %v1341 = vpop.f32.mrb[0].mxu0
        %v1342 = vadd.f32 %v1239, %v1341
        %v1343 = vpop.f32.mrb[0].mxu0
        %v1344 = vadd.f32 %v1241, %v1343
        %v1345 = vpop.f32.mrb[0].mxu0
        %v1346 = vadd.f32 %v1243, %v1345
        %1347 = vmatprep.mubr.bf16.mxu0 %v367
        %1348 = vmatmul.mubr.bf16.gmra.mrb[0].mxu0 %v366
        %v1349 = vpop.f32.mrb[0].mxu0
        %v1350 = vadd.f32 %v1247, %v1349
        %v1351 = vpop.f32.mrb[0].mxu0
        %v1352 = vadd.f32 %v1249, %v1351
        %v1353 = vpop.f32.mrb[0].mxu0
        %v1354 = vadd.f32 %v1251, %v1353
        %v1355 = vpop.f32.mrb[0].mxu0
        %v1356 = vadd.f32 %v1253, %v1355
        %1357 = vmatprep.mubr.bf16.mxu0 %v371
        %1358 = vmatmul.mubr.bf16.gmra.mrb[0].mxu0 %v370
        %v1359 = vpop.f32.mrb[0].mxu0
        %v1360 = vadd.f32 %v1257, %v1359
        %v1361 = vpop.f32.mrb[0].mxu0
        %v1362 = vadd.f32 %v1259, %v1361
        %v1363 = vpop.f32.mrb[0].mxu0
        %v1364 = vadd.f32 %v1261, %v1363
        %v1365 = vpop.f32.mrb[0].mxu0
        %v1366 = vadd.f32 %v1263, %v1365
        %1367 = vdwg.mxu0
        %1368 = vmatprep.subr.bf16.mxu0 %v909
        %1369 = vmatpush1.bf16.msra.mxu0 %v908
        %1370 = vmatprep.subr.bf16.mxu0 %v913
        %1371 = vmatpush1.bf16.msra.mxu0 %v912
        %1372 = vmatprep.subr.bf16.mxu0 %v917
        %1373 = vmatpush1.bf16.msra.mxu0 %v916
        %1374 = vmatprep.subr.bf16.mxu0 %v921
        %1375 = vmatpush1.bf16.msra.mxu0 %v920
        %1376 = vmatprep.subr.bf16.mxu0 %v925
        %1377 = vmatpush1.bf16.msra.mxu0 %v924
        %1378 = vmatprep.subr.bf16.mxu0 %v929
        %1379 = vmatpush1.bf16.msra.mxu0 %v928
        %1380 = vmatprep.subr.bf16.mxu0 %v933
        %1381 = vmatpush1.bf16.msra.mxu0 %v932
        %1382 = vmatprep.subr.bf16.mxu0 %v937
        %1383 = vmatpush1.bf16.msra.mxu0 %v936
        %1384 = vmatprep.subr.bf16.mxu0 %v941
        %1385 = vmatpush1.bf16.msra.mxu0 %v940
        %1386 = vmatprep.subr.bf16.mxu0 %v945
        %1387 = vmatpush1.bf16.msra.mxu0 %v944
        %1388 = vmatprep.subr.bf16.mxu0 %v949
        %1389 = vmatpush1.bf16.msra.mxu0 %v948
        %1390 = vmatprep.subr.bf16.mxu0 %v953
        %1391 = vmatpush1.bf16.msra.mxu0 %v952
        %1392 = vmatprep.subr.bf16.mxu0 %v957
        %1393 = vmatpush1.bf16.msra.mxu0 %v956
        %1394 = vmatprep.subr.bf16.mxu0 %v961
        %1395 = vmatpush1.bf16.msra.mxu0 %v960
        %1396 = vmatprep.subr.bf16.mxu0 %v965
        %1397 = vmatpush1.bf16.msra.mxu0 %v964
        %1398 = vmatprep.subr.bf16.mxu0 %v969
        %1399 = vmatpush1.bf16.msra.mxu0 %v968
        %1400 = vmatprep.mubr.bf16.mxu0 %v345
        %1401 = vmatmul.mubr.bf16.gmra.mrb[0].mxu0 %v344
        %v1402 = vpop.f32.mrb[0].mxu0
        %v1403 = vadd.f32 %v513, %v1402
        %v1404 = vpop.f32.mrb[0].mxu0
        %v1405 = vadd.f32 %v517, %v1404
        %v1406 = vpop.f32.mrb[0].mxu0
        %v1407 = vadd.f32 %v513, %v1406
        %v1408 = vpop.f32.mrb[0].mxu0
        %v1409 = vadd.f32 %v517, %v1408
        %1410 = vmatprep.mubr.bf16.mxu0 %v349
        %1411 = vmatmul.mubr.bf16.gmra.mrb[0].mxu0 %v348
        %v1412 = vpop.f32.mrb[0].mxu0
        %v1413 = vadd.f32 %v513, %v1412
        %v1414 = vpop.f32.mrb[0].mxu0
        %v1415 = vadd.f32 %v517, %v1414
        %v1416 = vpop.f32.mrb[0].mxu0
        %v1417 = vadd.f32 %v513, %v1416
        %v1418 = vpop.f32.mrb[0].mxu0
        %v1419 = vadd.f32 %v517, %v1418
        %1420 = vmatprep.mubr.bf16.mxu0 %v353
        %1421 = vmatmul.mubr.bf16.gmra.mrb[0].mxu0 %v352
        %v1422 = vpop.f32.mrb[0].mxu0
        %v1423 = vadd.f32 %v513, %v1422
        %v1424 = vpop.f32.mrb[0].mxu0
        %v1425 = vadd.f32 %v517, %v1424
        %v1426 = vpop.f32.mrb[0].mxu0
        %v1427 = vadd.f32 %v513, %v1426
        %v1428 = vpop.f32.mrb[0].mxu0
        %v1429 = vadd.f32 %v517, %v1428
        %1430 = vmatprep.mubr.bf16.mxu0 %v357
        %1431 = vmatmul.mubr.bf16.gmra.mrb[0].mxu0 %v356
        %v1432 = vpop.f32.mrb[0].mxu0
        %v1433 = vadd.f32 %v513, %v1432
        %v1434 = vpop.f32.mrb[0].mxu0
        %v1435 = vadd.f32 %v517, %v1434
        %v1436 = vpop.f32.mrb[0].mxu0
        %v1437 = vadd.f32 %v513, %v1436
        %v1438 = vpop.f32.mrb[0].mxu0
        %v1439 = vadd.f32 %v517, %v1438
        %1440 = vmatprep.mubr.bf16.mxu0 %v361
        %1441 = vmatmul.mubr.bf16.gmra.mrb[0].mxu0 %v360
        %v1442 = vpop.f32.mrb[0].mxu0
        %v1443 = vadd.f32 %v513, %v1442
        %v1444 = vpop.f32.mrb[0].mxu0
        %v1445 = vadd.f32 %v517, %v1444
        %v1446 = vpop.f32.mrb[0].mxu0
        %v1447 = vadd.f32 %v513, %v1446
        %v1448 = vpop.f32.mrb[0].mxu0
        %v1449 = vadd.f32 %v517, %v1448
        %1450 = vmatprep.mubr.bf16.mxu0 %v365
        %1451 = vmatmul.mubr.bf16.gmra.mrb[0].mxu0 %v364
        %v1452 = vpop.f32.mrb[0].mxu0
        %v1453 = vadd.f32 %v513, %v1452
        %v1454 = vpop.f32.mrb[0].mxu0
        %v1455 = vadd.f32 %v517, %v1454
        %v1456 = vpop.f32.mrb[0].mxu0
        %v1457 = vadd.f32 %v513, %v1456
        %v1458 = vpop.f32.mrb[0].mxu0
        %v1459 = vadd.f32 %v517, %v1458
        %1460 = vmatprep.mubr.bf16.mxu0 %v369
        %1461 = vmatmul.mubr.bf16.gmra.mrb[0].mxu0 %v368
        %v1462 = vpop.f32.mrb[0].mxu0
        %v1463 = vadd.f32 %v513, %v1462
        %v1464 = vpop.f32.mrb[0].mxu0
        %v1465 = vadd.f32 %v517, %v1464
        %v1466 = vpop.f32.mrb[0].mxu0
        %v1467 = vadd.f32 %v513, %v1466
        %v1468 = vpop.f32.mrb[0].mxu0
        %v1469 = vadd.f32 %v517, %v1468
        %1470 = vdwg.mxu0
        %1471 = vmatprep.subr.bf16.mxu0 %v973
        %1472 = vmatpush1.bf16.msra.mxu0 %v972
        %1473 = vmatprep.subr.bf16.mxu0 %v977
        %1474 = vmatpush1.bf16.msra.mxu0 %v976
        %1475 = vmatprep.subr.bf16.mxu0 %v981
        %1476 = vmatpush1.bf16.msra.mxu0 %v980
        %1477 = vmatprep.subr.bf16.mxu0 %v985
        %1478 = vmatpush1.bf16.msra.mxu0 %v984
        %1479 = vmatprep.subr.bf16.mxu0 %v989
        %1480 = vmatpush1.bf16.msra.mxu0 %v988
        %1481 = vmatprep.subr.bf16.mxu0 %v993
        %1482 = vmatpush1.bf16.msra.mxu0 %v992
        %1483 = vmatprep.subr.bf16.mxu0 %v997
        %1484 = vmatpush1.bf16.msra.mxu0 %v996
        %1485 = vmatprep.subr.bf16.mxu0 %v1001
        %1486 = vmatpush1.bf16.msra.mxu0 %v1000
        %1487 = vmatprep.subr.bf16.mxu0 %v1005
        %1488 = vmatpush1.bf16.msra.mxu0 %v1004
        %1489 = vmatprep.subr.bf16.mxu0 %v1009
        %1490 = vmatpush1.bf16.msra.mxu0 %v1008
        %1491 = vmatprep.subr.bf16.mxu0 %v1013
        %1492 = vmatpush1.bf16.msra.mxu0 %v1012
        %1493 = vmatprep.subr.bf16.mxu0 %v1017
        %1494 = vmatpush1.bf16.msra.mxu0 %v1016
        %1495 = vmatprep.subr.bf16.mxu0 %v1021
        %1496 = vmatpush1.bf16.msra.mxu0 %v1020
        %1497 = vmatprep.subr.bf16.mxu0 %v1025
        %1498 = vmatpush1.bf16.msra.mxu0 %v1024
        %1499 = vmatprep.subr.bf16.mxu0 %v1029
        %1500 = vmatpush1.bf16.msra.mxu0 %v1028
        %1501 = vmatprep.subr.bf16.mxu0 %v1033
        %1502 = vmatpush1.bf16.msra.mxu0 %v1032
        %1503 = vmatprep.mubr.bf16.mxu0 %v347
        %1504 = vmatmul.mubr.bf16.gmra.mrb[0].mxu0 %v346
        %v1505 = vpop.f32.mrb[0].mxu0
        %v1506 = vadd.f32 %v1403, %v1505
        %v1507 = vpop.f32.mrb[0].mxu0
        %v1508 = vadd.f32 %v1405, %v1507
        %v1509 = vpop.f32.mrb[0].mxu0
        %v1510 = vadd.f32 %v1407, %v1509
        %v1511 = vpop.f32.mrb[0].mxu0
        %v1512 = vadd.f32 %v1409, %v1511
        %1513 = vmatprep.mubr.bf16.mxu0 %v351
        %1514 = vmatmul.mubr.bf16.gmra.mrb[0].mxu0 %v350
        %v1515 = vpop.f32.mrb[0].mxu0
        %v1516 = vadd.f32 %v1413, %v1515
        %v1517 = vpop.f32.mrb[0].mxu0
        %v1518 = vadd.f32 %v1415, %v1517
        %v1519 = vpop.f32.mrb[0].mxu0
        %v1520 = vadd.f32 %v1417, %v1519
        %v1521 = vpop.f32.mrb[0].mxu0
        %v1522 = vadd.f32 %v1419, %v1521
        %1523 = vmatprep.mubr.bf16.mxu0 %v355
        %1524 = vmatmul.mubr.bf16.gmra.mrb[0].mxu0 %v354
        %v1525 = vpop.f32.mrb[0].mxu0
        %v1526 = vadd.f32 %v1423, %v1525
        %v1527 = vpop.f32.mrb[0].mxu0
        %v1528 = vadd.f32 %v1425, %v1527
        %v1529 = vpop.f32.mrb[0].mxu0
        %v1530 = vadd.f32 %v1427, %v1529
        %v1531 = vpop.f32.mrb[0].mxu0
        %v1532 = vadd.f32 %v1429, %v1531
        %1533 = vmatprep.mubr.bf16.mxu0 %v359
        %1534 = vmatmul.mubr.bf16.gmra.mrb[0].mxu0 %v358
        %v1535 = vpop.f32.mrb[0].mxu0
        %v1536 = vadd.f32 %v1433, %v1535
        %v1537 = vpop.f32.mrb[0].mxu0
        %v1538 = vadd.f32 %v1435, %v1537
        %v1539 = vpop.f32.mrb[0].mxu0
        %v1540 = vadd.f32 %v1437, %v1539
        %v1541 = vpop.f32.mrb[0].mxu0
        %v1542 = vadd.f32 %v1439, %v1541
        %1543 = vmatprep.mubr.bf16.mxu0 %v363
        %1544 = vmatmul.mubr.bf16.gmra.mrb[0].mxu0 %v362
        %v1545 = vpop.f32.mrb[0].mxu0
        %v1546 = vadd.f32 %v1443, %v1545
        %v1547 = vpop.f32.mrb[0].mxu0
        %v1548 = vadd.f32 %v1445, %v1547
        %v1549 = vpop.f32.mrb[0].mxu0
        %v1550 = vadd.f32 %v1447, %v1549
        %v1551 = vpop.f32.mrb[0].mxu0
        %v1552 = vadd.f32 %v1449, %v1551
        %1553 = vmatprep.mubr.bf16.mxu0 %v367
        %1554 = vmatmul.mubr.bf16.gmra.mrb[0].mxu0 %v366
        %v1555 = vpop.f32.mrb[0].mxu0
        %v1556 = vadd.f32 %v1453, %v1555
        %v1557 = vpop.f32.mrb[0].mxu0
        %v1558 = vadd.f32 %v1455, %v1557
        %v1559 = vpop.f32.mrb[0].mxu0
        %v1560 = vadd.f32 %v1457, %v1559
        %v1561 = vpop.f32.mrb[0].mxu0
        %v1562 = vadd.f32 %v1459, %v1561
        %1563 = vmatprep.mubr.bf16.mxu0 %v371
        %1564 = vmatmul.mubr.bf16.gmra.mrb[0].mxu0 %v370
        %v1565 = vpop.f32.mrb[0].mxu0
        %v1566 = vadd.f32 %v1463, %v1565
        %v1567 = vpop.f32.mrb[0].mxu0
        %v1568 = vadd.f32 %v1465, %v1567
        %v1569 = vpop.f32.mrb[0].mxu0
        %v1570 = vadd.f32 %v1467, %v1569
        %v1571 = vpop.f32.mrb[0].mxu0
        %v1572 = vadd.f32 %v1469, %v1571
        %1573 = vdwg.mxu0
        %v1574 = vmax.f32 %v1300, 0.0
        %v1575 = vmax.f32 %v1302, 0.0
        %v1576 = vmax.f32 %v1506, 0.0
        %v1577 = vmax.f32 %v1508, 0.0
        %v1578 = vmax.f32 %v1304, 0.0
        %v1579 = vmax.f32 %v1306, 0.0
        %v1580 = vmax.f32 %v1510, 0.0
        %v1581 = vmax.f32 %v1512, 0.0
        %v1582 = vmax.f32 %v1310, 0.0
        %v1583 = vmax.f32 %v1312, 0.0
        %v1584 = vmax.f32 %v1516, 0.0
        %v1585 = vmax.f32 %v1518, 0.0
        %v1586 = vmax.f32 %v1314, 0.0
        %v1587 = vmax.f32 %v1316, 0.0
        %v1588 = vmax.f32 %v1520, 0.0
        %v1589 = vmax.f32 %v1522, 0.0
        %v1590 = vmax.f32 %v1320, 0.0
        %v1591 = vmax.f32 %v1322, 0.0
        %v1592 = vmax.f32 %v1526, 0.0
        %v1593 = vmax.f32 %v1528, 0.0
        %v1594 = vmax.f32 %v1324, 0.0
        %v1595 = vmax.f32 %v1326, 0.0
        %v1596 = vmax.f32 %v1530, 0.0
        %v1597 = vmax.f32 %v1532, 0.0
        %v1598 = vmax.f32 %v1330, 0.0
        %v1599 = vmax.f32 %v1332, 0.0
        %v1600 = vmax.f32 %v1536, 0.0
        %v1601 = vmax.f32 %v1538, 0.0
        %v1602 = vmax.f32 %v1334, 0.0
        %v1603 = vmax.f32 %v1336, 0.0
        %v1604 = vmax.f32 %v1540, 0.0
        %v1605 = vmax.f32 %v1542, 0.0
        %v1606 = vmax.f32 %v1340, 0.0
        %v1607 = vmax.f32 %v1342, 0.0
        %v1608 = vmax.f32 %v1546, 0.0
        %v1609 = vmax.f32 %v1548, 0.0
        %v1610 = vmax.f32 %v1344, 0.0
        %v1611 = vmax.f32 %v1346, 0.0
        %v1612 = vmax.f32 %v1550, 0.0
        %v1613 = vmax.f32 %v1552, 0.0
        %v1614 = vmax.f32 %v1350, 0.0
        %v1615 = vmax.f32 %v1352, 0.0
        %v1616 = vmax.f32 %v1556, 0.0
        %v1617 = vmax.f32 %v1558, 0.0
        %v1618 = vmax.f32 %v1354, 0.0
        %v1619 = vmax.f32 %v1356, 0.0
        %v1620 = vmax.f32 %v1560, 0.0
        %v1621 = vmax.f32 %v1562, 0.0
        %v1622 = vmax.f32 %v1360, 0.0
        %v1623 = vmax.f32 %v1362, 0.0
        %v1624 = vmax.f32 %v1566, 0.0
        %v1625 = vmax.f32 %v1568, 0.0
        %v1626 = vmax.f32 %v1364, 0.0
        %v1627 = vmax.f32 %v1366, 0.0
        %v1628 = vmax.f32 %v1570, 0.0
        %v1629 = vmax.f32 %v1572, 0.0
        %v1630 = vpack.c.bf16 %v1578, %v1574
        %v1631 = vpack.c.bf16 %v1579, %v1575
        %v1632 = vpack.c.bf16 %v1580, %v1576
        %v1633 = vpack.c.bf16 %v1581, %v1577
        %v1634 = vpack.c.bf16 %v1586, %v1582
        %v1635 = vpack.c.bf16 %v1587, %v1583
        %v1636 = vpack.c.bf16 %v1588, %v1584
        %v1637 = vpack.c.bf16 %v1589, %v1585
        %v1638 = vpack.c.bf16 %v1594, %v1590
        %v1639 = vpack.c.bf16 %v1595, %v1591
        %v1640 = vpack.c.bf16 %v1596, %v1592
        %v1641 = vpack.c.bf16 %v1597, %v1593
        %v1642 = vpack.c.bf16 %v1602, %v1598
        %v1643 = vpack.c.bf16 %v1603, %v1599
        %v1644 = vpack.c.bf16 %v1604, %v1600
        %v1645 = vpack.c.bf16 %v1605, %v1601
        %v1646 = vpack.c.bf16 %v1610, %v1606
        %v1647 = vpack.c.bf16 %v1611, %v1607
        %v1648 = vpack.c.bf16 %v1612, %v1608
        %v1649 = vpack.c.bf16 %v1613, %v1609
        %v1650 = vpack.c.bf16 %v1618, %v1614
        %v1651 = vpack.c.bf16 %v1619, %v1615
        %v1652 = vpack.c.bf16 %v1620, %v1616
        %v1653 = vpack.c.bf16 %v1621, %v1617
        %v1654 = vpack.c.bf16 %v1626, %v1622
        %v1655 = vpack.c.bf16 %v1627, %v1623
        %v1656 = vpack.c.bf16 %v1628, %v1624
        %v1657 = vpack.c.bf16 %v1629, %v1625
        %v1658 = vld [vmem:[#allocation6] sm:$0xf]
        %v1659 = vld [vmem:[#allocation6 + $0x4] sm:$0xf]
        %v1660 = vld [vmem:[#allocation6 + $0x8] sm:$0xf]
        %v1661 = vld [vmem:[#allocation6 + $0xc] sm:$0xf]
        %v1662 = vld [vmem:[#allocation6 + $0x10] sm:$0xf]
        %v1663 = vld [vmem:[#allocation6 + $0x14] sm:$0xf]
        %v1664 = vld [vmem:[#allocation6 + $0x18] sm:$0xf]
        %v1665 = vld [vmem:[#allocation6 + $0x1c] sm:$0xf]
        %v1666 = vld [vmem:[#allocation6 + $0x20] sm:$0xf]
        %v1667 = vld [vmem:[#allocation6 + $0x24] sm:$0xf]
        %v1668 = vld [vmem:[#allocation6 + $0x28] sm:$0xf]
        %v1669 = vld [vmem:[#allocation6 + $0x2c] sm:$0xf]
        %v1670 = vld [vmem:[#allocation6 + $0x30] sm:$0xf]
        %v1671 = vld [vmem:[#allocation6 + $0x34] sm:$0xf]
        %v1672 = vld [vmem:[#allocation6 + $0x38] sm:$0xf]
        %v1673 = vld [vmem:[#allocation6 + $0x3c] sm:$0xf]
        %v1674 = vld [vmem:[#allocation6 + $0x40] sm:$0xf]
        %v1675 = vld [vmem:[#allocation6 + $0x44] sm:$0xf]
        %v1676 = vld [vmem:[#allocation6 + $0x48] sm:$0xf]
        %v1677 = vld [vmem:[#allocation6 + $0x4c] sm:$0xf]
        %v1678 = vld [vmem:[#allocation6 + $0x50] sm:$0xf]
        %v1679 = vld [vmem:[#allocation6 + $0x54] sm:$0xf]
        %v1680 = vld [vmem:[#allocation6 + $0x58] sm:$0xf]
        %v1681 = vld [vmem:[#allocation6 + $0x5c] sm:$0xf]
        %v1682 = vld [vmem:[#allocation6 + $0x60] sm:$0xf]
        %v1683 = vld [vmem:[#allocation6 + $0x64] sm:$0xf]
        %v1684 = vld [vmem:[#allocation6 + $0x68] sm:$0xf]
        %v1685 = vld [vmem:[#allocation6 + $0x6c] sm:$0xf]
        %v1686 = vld [vmem:[#allocation6 + $0x70] sm:$0xf]
        %v1687 = vld [vmem:[#allocation6 + $0x74] sm:$0xf]
        %v1688 = vld [vmem:[#allocation6 + $0x78] sm:$0xf]
        %v1689 = vld [vmem:[#allocation6 + $0x7c] sm:$0xf]
        %v1690 = vld [vmem:[#allocation6 + $0x80] sm:$0xf]
        %v1691 = vld [vmem:[#allocation6 + $0x84] sm:$0xf]
        %v1692 = vld [vmem:[#allocation6 + $0x88] sm:$0xf]
        %v1693 = vld [vmem:[#allocation6 + $0x8c] sm:$0xf]
        %v1694 = vld [vmem:[#allocation6 + $0x90] sm:$0xf]
        %v1695 = vld [vmem:[#allocation6 + $0x94] sm:$0xf]
        %v1696 = vld [vmem:[#allocation6 + $0x98] sm:$0xf]
        %v1697 = vld [vmem:[#allocation6 + $0x9c] sm:$0xf]
        %v1698 = vld [vmem:[#allocation6 + $0xa0] sm:$0xf]
        %v1699 = vld [vmem:[#allocation6 + $0xa4] sm:$0xf]
        %v1700 = vld [vmem:[#allocation6 + $0xa8] sm:$0xf]
        %v1701 = vld [vmem:[#allocation6 + $0xac] sm:$0xf]
        %v1702 = vld [vmem:[#allocation6 + $0xb0] sm:$0xf]
        %v1703 = vld [vmem:[#allocation6 + $0xb4] sm:$0xf]
        %v1704 = vld [vmem:[#allocation6 + $0xb8] sm:$0xf]
        %v1705 = vld [vmem:[#allocation6 + $0xbc] sm:$0xf]
        %v1706 = vld [vmem:[#allocation6 + $0xc0] sm:$0xf]
        %v1707 = vld [vmem:[#allocation6 + $0xc4] sm:$0xf]
        %v1708 = vld [vmem:[#allocation6 + $0xc8] sm:$0xf]
        %v1709 = vld [vmem:[#allocation6 + $0xcc] sm:$0xf]
        %v1710 = vld [vmem:[#allocation6 + $0xd0] sm:$0xf]
        %v1711 = vld [vmem:[#allocation6 + $0xd4] sm:$0xf]
        %v1712 = vld [vmem:[#allocation6 + $0xd8] sm:$0xf]
        %v1713 = vld [vmem:[#allocation6 + $0xdc] sm:$0xf]
        %v1714 = vld [vmem:[#allocation6 + $0xe0] sm:$0xf]
        %v1715 = vld [vmem:[#allocation6 + $0xe4] sm:$0xf]
        %v1716 = vld [vmem:[#allocation6 + $0xe8] sm:$0xf]
        %v1717 = vld [vmem:[#allocation6 + $0xec] sm:$0xf]
        %v1718 = vld [vmem:[#allocation6 + $0xf0] sm:$0xf]
        %v1719 = vld [vmem:[#allocation6 + $0xf4] sm:$0xf]
        %v1720 = vld [vmem:[#allocation6 + $0xf8] sm:$0xf]
        %v1721 = vld [vmem:[#allocation6 + $0xfc] sm:$0xf]
        %v1722 = vld [vmem:[%s4] sm:$0x1]
        %v1724 = vlaneseq
        %v1725 = vshrl.u32 %v1724, 7
        %v1726 = vsub.s32 0, %v1725
        %v1727 = vrot.slane %v1722, %v1726
        %v1793 = vunpack.c.l.b16 %v1658
        %v1794 = vunpack.c.l.b16 %v1659
        %v1795 = vunpack.c.l.b16 %v1660
        %v1796 = vunpack.c.l.b16 %v1661
        %v1797 = vunpack.c.l.b16 %v1662
        %v1798 = vunpack.c.l.b16 %v1663
        %v1799 = vunpack.c.l.b16 %v1664
        %v1800 = vunpack.c.l.b16 %v1665
        %v1801 = vunpack.c.l.b16 %v1666
        %v1802 = vunpack.c.l.b16 %v1667
        %v1803 = vunpack.c.l.b16 %v1668
        %v1804 = vunpack.c.l.b16 %v1669
        %v1805 = vunpack.c.l.b16 %v1670
        %v1806 = vunpack.c.l.b16 %v1671
        %v1807 = vunpack.c.l.b16 %v1672
        %v1808 = vunpack.c.l.b16 %v1673
        %v1809 = vunpack.c.l.b16 %v1674
        %v1810 = vunpack.c.l.b16 %v1675
        %v1811 = vunpack.c.l.b16 %v1676
        %v1812 = vunpack.c.l.b16 %v1677
        %v1813 = vunpack.c.l.b16 %v1678
        %v1814 = vunpack.c.l.b16 %v1679
        %v1815 = vunpack.c.l.b16 %v1680
        %v1816 = vunpack.c.l.b16 %v1681
        %v1817 = vunpack.c.l.b16 %v1682
        %v1818 = vunpack.c.l.b16 %v1683
        %v1819 = vunpack.c.l.b16 %v1684
        %v1820 = vunpack.c.l.b16 %v1685
        %v1821 = vunpack.c.l.b16 %v1686
        %v1822 = vunpack.c.l.b16 %v1687
        %v1823 = vunpack.c.l.b16 %v1688
        %v1824 = vunpack.c.l.b16 %v1689
        %v1825 = vunpack.c.l.b16 %v1690
        %v1826 = vunpack.c.l.b16 %v1691
        %v1827 = vunpack.c.l.b16 %v1692
        %v1828 = vunpack.c.l.b16 %v1693
        %v1829 = vunpack.c.l.b16 %v1694
        %v1830 = vunpack.c.l.b16 %v1695
        %v1831 = vunpack.c.l.b16 %v1696
        %v1832 = vunpack.c.l.b16 %v1697
        %v1833 = vunpack.c.l.b16 %v1698
        %v1834 = vunpack.c.l.b16 %v1699
        %v1835 = vunpack.c.l.b16 %v1700
        %v1836 = vunpack.c.l.b16 %v1701
        %v1837 = vunpack.c.l.b16 %v1702
        %v1838 = vunpack.c.l.b16 %v1703
        %v1839 = vunpack.c.l.b16 %v1704
        %v1840 = vunpack.c.l.b16 %v1705
        %v1841 = vunpack.c.l.b16 %v1706
        %v1842 = vunpack.c.l.b16 %v1707
        %v1843 = vunpack.c.l.b16 %v1708
        %v1844 = vunpack.c.l.b16 %v1709
        %v1845 = vunpack.c.l.b16 %v1710
        %v1846 = vunpack.c.l.b16 %v1711
        %v1847 = vunpack.c.l.b16 %v1712
        %v1848 = vunpack.c.l.b16 %v1713
        %v1849 = vunpack.c.l.b16 %v1714
        %v1850 = vunpack.c.l.b16 %v1715
        %v1851 = vunpack.c.l.b16 %v1716
        %v1852 = vunpack.c.l.b16 %v1717
        %v1853 = vunpack.c.l.b16 %v1718
        %v1854 = vunpack.c.l.b16 %v1719
        %v1855 = vunpack.c.l.b16 %v1720
        %v1856 = vunpack.c.l.b16 %v1721
        %v1857 = vpack.c.b16 %v1794, %v1793
        %v1858 = vpack.c.b16 %v1796, %v1795
        %v1859 = vpack.c.b16 %v1798, %v1797
        %v1860 = vpack.c.b16 %v1800, %v1799
        %v1861 = vpack.c.b16 %v1802, %v1801
        %v1862 = vpack.c.b16 %v1804, %v1803
        %v1863 = vpack.c.b16 %v1806, %v1805
        %v1864 = vpack.c.b16 %v1808, %v1807
        %v1865 = vpack.c.b16 %v1810, %v1809
        %v1866 = vpack.c.b16 %v1812, %v1811
        %v1867 = vpack.c.b16 %v1814, %v1813
        %v1868 = vpack.c.b16 %v1816, %v1815
        %v1869 = vpack.c.b16 %v1818, %v1817
        %v1870 = vpack.c.b16 %v1820, %v1819
        %v1871 = vpack.c.b16 %v1822, %v1821
        %v1872 = vpack.c.b16 %v1824, %v1823
        %v1873 = vpack.c.b16 %v1826, %v1825
        %v1874 = vpack.c.b16 %v1828, %v1827
        %v1875 = vpack.c.b16 %v1830, %v1829
        %v1876 = vpack.c.b16 %v1832, %v1831
        %v1877 = vpack.c.b16 %v1834, %v1833
        %v1878 = vpack.c.b16 %v1836, %v1835
        %v1879 = vpack.c.b16 %v1838, %v1837
        %v1880 = vpack.c.b16 %v1840, %v1839
        %v1881 = vpack.c.b16 %v1842, %v1841
        %v1882 = vpack.c.b16 %v1844, %v1843
        %v1883 = vpack.c.b16 %v1846, %v1845
        %v1884 = vpack.c.b16 %v1848, %v1847
        %v1885 = vpack.c.b16 %v1850, %v1849
        %v1886 = vpack.c.b16 %v1852, %v1851
        %v1887 = vpack.c.b16 %v1854, %v1853
        %v1888 = vpack.c.b16 %v1856, %v1855
        %1921 = vmatprep.subr.bf16.mxu0 0
        %1922 = vmatpush1.bf16.msra.mxu0 %v1857
        %1923 = vmatprep.subr.bf16.mxu0 0
        %1924 = vmatpush1.bf16.msra.mxu0 %v1858
        %1925 = vmatprep.subr.bf16.mxu0 0
        %1926 = vmatpush1.bf16.msra.mxu0 %v1859
        %1927 = vmatprep.subr.bf16.mxu0 0
        %1928 = vmatpush1.bf16.msra.mxu0 %v1860
        %1929 = vmatprep.subr.bf16.mxu0 0
        %1930 = vmatpush1.bf16.msra.mxu0 %v1861
        %1931 = vmatprep.subr.bf16.mxu0 0
        %1932 = vmatpush1.bf16.msra.mxu0 %v1862
        %1933 = vmatprep.subr.bf16.mxu0 0
        %1934 = vmatpush1.bf16.msra.mxu0 %v1863
        %1935 = vmatprep.subr.bf16.mxu0 0
        %1936 = vmatpush1.bf16.msra.mxu0 %v1864
        %1937 = vmatprep.subr.bf16.mxu0 0
        %1938 = vmatpush1.bf16.msra.mxu0 %v1865
        %1939 = vmatprep.subr.bf16.mxu0 0
        %1940 = vmatpush1.bf16.msra.mxu0 %v1866
        %1941 = vmatprep.subr.bf16.mxu0 0
        %1942 = vmatpush1.bf16.msra.mxu0 %v1867
        %1943 = vmatprep.subr.bf16.mxu0 0
        %1944 = vmatpush1.bf16.msra.mxu0 %v1868
        %1945 = vmatprep.subr.bf16.mxu0 0
        %1946 = vmatpush1.bf16.msra.mxu0 %v1869
        %1947 = vmatprep.subr.bf16.mxu0 0
        %1948 = vmatpush1.bf16.msra.mxu0 %v1870
        %1949 = vmatprep.subr.bf16.mxu0 0
        %1950 = vmatpush1.bf16.msra.mxu0 %v1871
        %1951 = vmatprep.subr.bf16.mxu0 0
        %1952 = vmatpush1.bf16.msra.mxu0 %v1872
        %1953 = vmatprep.mubr.bf16.mxu0 %v1631
        %1954 = vmatmul.mubr.bf16.gmra.mrb[0].mxu0 %v1630
        %v1955 = vpop.f32.mrb[0].mxu0
        %v1956 = vadd.f32 %v1727, %v1955
        %v1957 = vpop.f32.mrb[0].mxu0
        %v1958 = vpop.f32.mrb[0].mxu0
        %v1959 = vadd.f32 %v1727, %v1958
        %v1960 = vpop.f32.mrb[0].mxu0
        %1961 = vmatprep.mubr.bf16.mxu0 %v1635
        %1962 = vmatmul.mubr.bf16.gmra.mrb[0].mxu0 %v1634
        %v1963 = vpop.f32.mrb[0].mxu0
        %v1964 = vadd.f32 %v1727, %v1963
        %v1965 = vpop.f32.mrb[0].mxu0
        %v1966 = vpop.f32.mrb[0].mxu0
        %v1967 = vadd.f32 %v1727, %v1966
        %v1968 = vpop.f32.mrb[0].mxu0
        %1969 = vmatprep.mubr.bf16.mxu0 %v1639
        %1970 = vmatmul.mubr.bf16.gmra.mrb[0].mxu0 %v1638
        %v1971 = vpop.f32.mrb[0].mxu0
        %v1972 = vadd.f32 %v1727, %v1971
        %v1973 = vpop.f32.mrb[0].mxu0
        %v1974 = vpop.f32.mrb[0].mxu0
        %v1975 = vadd.f32 %v1727, %v1974
        %v1976 = vpop.f32.mrb[0].mxu0
        %1977 = vmatprep.mubr.bf16.mxu0 %v1643
        %1978 = vmatmul.mubr.bf16.gmra.mrb[0].mxu0 %v1642
        %v1979 = vpop.f32.mrb[0].mxu0
        %v1980 = vadd.f32 %v1727, %v1979
        %v1981 = vpop.f32.mrb[0].mxu0
        %v1982 = vpop.f32.mrb[0].mxu0
        %v1983 = vadd.f32 %v1727, %v1982
        %v1984 = vpop.f32.mrb[0].mxu0
        %1985 = vmatprep.mubr.bf16.mxu0 %v1647
        %1986 = vmatmul.mubr.bf16.gmra.mrb[0].mxu0 %v1646
        %v1987 = vpop.f32.mrb[0].mxu0
        %v1988 = vadd.f32 %v1727, %v1987
        %v1989 = vpop.f32.mrb[0].mxu0
        %v1990 = vpop.f32.mrb[0].mxu0
        %v1991 = vadd.f32 %v1727, %v1990
        %v1992 = vpop.f32.mrb[0].mxu0
        %1993 = vmatprep.mubr.bf16.mxu0 %v1651
        %1994 = vmatmul.mubr.bf16.gmra.mrb[0].mxu0 %v1650
        %v1995 = vpop.f32.mrb[0].mxu0
        %v1996 = vadd.f32 %v1727, %v1995
        %v1997 = vpop.f32.mrb[0].mxu0
        %v1998 = vpop.f32.mrb[0].mxu0
        %v1999 = vadd.f32 %v1727, %v1998
        %v2000 = vpop.f32.mrb[0].mxu0
        %2001 = vmatprep.mubr.bf16.mxu0 %v1655
        %2002 = vmatmul.mubr.bf16.gmra.mrb[0].mxu0 %v1654
        %v2003 = vpop.f32.mrb[0].mxu0
        %v2004 = vadd.f32 %v1727, %v2003
        %v2005 = vpop.f32.mrb[0].mxu0
        %v2006 = vpop.f32.mrb[0].mxu0
        %v2007 = vadd.f32 %v1727, %v2006
        %v2008 = vpop.f32.mrb[0].mxu0
        %2009 = vdwg.mxu0
        %2010 = vmatprep.subr.bf16.mxu0 0
        %2011 = vmatpush1.bf16.msra.mxu0 %v1873
        %2012 = vmatprep.subr.bf16.mxu0 0
        %2013 = vmatpush1.bf16.msra.mxu0 %v1874
        %2014 = vmatprep.subr.bf16.mxu0 0
        %2015 = vmatpush1.bf16.msra.mxu0 %v1875
        %2016 = vmatprep.subr.bf16.mxu0 0
        %2017 = vmatpush1.bf16.msra.mxu0 %v1876
        %2018 = vmatprep.subr.bf16.mxu0 0
        %2019 = vmatpush1.bf16.msra.mxu0 %v1877
        %2020 = vmatprep.subr.bf16.mxu0 0
        %2021 = vmatpush1.bf16.msra.mxu0 %v1878
        %2022 = vmatprep.subr.bf16.mxu0 0
        %2023 = vmatpush1.bf16.msra.mxu0 %v1879
        %2024 = vmatprep.subr.bf16.mxu0 0
        %2025 = vmatpush1.bf16.msra.mxu0 %v1880
        %2026 = vmatprep.subr.bf16.mxu0 0
        %2027 = vmatpush1.bf16.msra.mxu0 %v1881
        %2028 = vmatprep.subr.bf16.mxu0 0
        %2029 = vmatpush1.bf16.msra.mxu0 %v1882
        %2030 = vmatprep.subr.bf16.mxu0 0
        %2031 = vmatpush1.bf16.msra.mxu0 %v1883
        %2032 = vmatprep.subr.bf16.mxu0 0
        %2033 = vmatpush1.bf16.msra.mxu0 %v1884
        %2034 = vmatprep.subr.bf16.mxu0 0
        %2035 = vmatpush1.bf16.msra.mxu0 %v1885
        %2036 = vmatprep.subr.bf16.mxu0 0
        %2037 = vmatpush1.bf16.msra.mxu0 %v1886
        %2038 = vmatprep.subr.bf16.mxu0 0
        %2039 = vmatpush1.bf16.msra.mxu0 %v1887
        %2040 = vmatprep.subr.bf16.mxu0 0
        %2041 = vmatpush1.bf16.msra.mxu0 %v1888
        %2042 = vmatprep.mubr.bf16.mxu0 %v1633
        %2043 = vmatmul.mubr.bf16.gmra.mrb[0].mxu0 %v1632
        %v2044 = vpop.f32.mrb[0].mxu0
        %v2045 = vadd.f32 %v1956, %v2044
        %v2046 = vpop.f32.mrb[0].mxu0
        %v2047 = vpop.f32.mrb[0].mxu0
        %v2048 = vadd.f32 %v1959, %v2047
        %v2049 = vpop.f32.mrb[0].mxu0
        %2050 = vmatprep.mubr.bf16.mxu0 %v1637
        %2051 = vmatmul.mubr.bf16.gmra.mrb[0].mxu0 %v1636
        %v2052 = vpop.f32.mrb[0].mxu0
        %v2053 = vadd.f32 %v1964, %v2052
        %v2054 = vpop.f32.mrb[0].mxu0
        %v2055 = vpop.f32.mrb[0].mxu0
        %v2056 = vadd.f32 %v1967, %v2055
        %v2057 = vpop.f32.mrb[0].mxu0
        %2058 = vmatprep.mubr.bf16.mxu0 %v1641
        %2059 = vmatmul.mubr.bf16.gmra.mrb[0].mxu0 %v1640
        %v2060 = vpop.f32.mrb[0].mxu0
        %v2061 = vadd.f32 %v1972, %v2060
        %v2062 = vpop.f32.mrb[0].mxu0
        %v2063 = vpop.f32.mrb[0].mxu0
        %v2064 = vadd.f32 %v1975, %v2063
        %v2065 = vpop.f32.mrb[0].mxu0
        %2066 = vmatprep.mubr.bf16.mxu0 %v1645
        %2067 = vmatmul.mubr.bf16.gmra.mrb[0].mxu0 %v1644
        %v2068 = vpop.f32.mrb[0].mxu0
        %v2069 = vadd.f32 %v1980, %v2068
        %v2070 = vpop.f32.mrb[0].mxu0
        %v2071 = vpop.f32.mrb[0].mxu0
        %v2072 = vadd.f32 %v1983, %v2071
        %v2073 = vpop.f32.mrb[0].mxu0
        %2074 = vmatprep.mubr.bf16.mxu0 %v1649
        %2075 = vmatmul.mubr.bf16.gmra.mrb[0].mxu0 %v1648
        %v2076 = vpop.f32.mrb[0].mxu0
        %v2077 = vadd.f32 %v1988, %v2076
        %v2078 = vpop.f32.mrb[0].mxu0
        %v2079 = vpop.f32.mrb[0].mxu0
        %v2080 = vadd.f32 %v1991, %v2079
        %v2081 = vpop.f32.mrb[0].mxu0
        %2082 = vmatprep.mubr.bf16.mxu0 %v1653
        %2083 = vmatmul.mubr.bf16.gmra.mrb[0].mxu0 %v1652
        %v2084 = vpop.f32.mrb[0].mxu0
        %v2085 = vadd.f32 %v1996, %v2084
        %v2086 = vpop.f32.mrb[0].mxu0
        %v2087 = vpop.f32.mrb[0].mxu0
        %v2088 = vadd.f32 %v1999, %v2087
        %v2089 = vpop.f32.mrb[0].mxu0
        %2090 = vmatprep.mubr.bf16.mxu0 %v1657
        %2091 = vmatmul.mubr.bf16.gmra.mrb[0].mxu0 %v1656
        %v2092 = vpop.f32.mrb[0].mxu0
        %v2093 = vadd.f32 %v2004, %v2092
        %v2094 = vpop.f32.mrb[0].mxu0
        %v2095 = vpop.f32.mrb[0].mxu0
        %v2096 = vadd.f32 %v2007, %v2095
        %v2097 = vpop.f32.mrb[0].mxu0
        %2098 = vdwg.mxu0
        %v2099 = vpack.c.bf16 %v2048, %v2045
        %v2100 = vpack.c.bf16 %v2056, %v2053
        %v2101 = vpack.c.bf16 %v2064, %v2061
        %v2102 = vpack.c.bf16 %v2072, %v2069
        %v2103 = vpack.c.bf16 %v2080, %v2077
        %v2104 = vpack.c.bf16 %v2088, %v2085
        %v2105 = vpack.c.bf16 %v2096, %v2093
        %v2113 = vunpack.c.l.b16 %v2099
        %v2114 = vunpack.c.h.b16 %v2099
        %v2115 = vunpack.c.l.b16 %v2100
        %v2116 = vunpack.c.h.b16 %v2100
        %v2117 = vunpack.c.l.b16 %v2101
        %v2118 = vunpack.c.h.b16 %v2101
        %v2119 = vunpack.c.l.b16 %v2102
        %v2120 = vunpack.c.h.b16 %v2102
        %v2121 = vunpack.c.l.b16 %v2103
        %v2122 = vunpack.c.h.b16 %v2103
        %v2123 = vunpack.c.l.b16 %v2104
        %v2124 = vunpack.c.h.b16 %v2104
        %v2125 = vunpack.c.l.b16 %v2105
        %v2126 = vunpack.c.h.b16 %v2105
        %v2127 = vpack.c.b16 %v2113, %v2113
        %v2128 = vpack.c.b16 %v2114, %v2114
        %v2129 = vpack.c.b16 %v2115, %v2115
        %v2130 = vpack.c.b16 %v2116, %v2116
        %v2131 = vpack.c.b16 %v2117, %v2117
        %v2132 = vpack.c.b16 %v2118, %v2118
        %v2133 = vpack.c.b16 %v2119, %v2119
        %v2134 = vpack.c.b16 %v2120, %v2120
        %v2135 = vpack.c.b16 %v2121, %v2121
        %v2136 = vpack.c.b16 %v2122, %v2122
        %v2137 = vpack.c.b16 %v2123, %v2123
        %v2138 = vpack.c.b16 %v2124, %v2124
        %v2139 = vpack.c.b16 %v2125, %v2125
        %v2140 = vpack.c.b16 %v2126, %v2126
        %2155 = vst [vmem:[%s275] sm:$0xf] %v2127
        %2156 = vst [vmem:[%s275 + $0x4] sm:$0xf] %v2128
        %2157 = vst [vmem:[%s275 + $0x8] sm:$0xf] %v2129
        %2158 = vst [vmem:[%s275 + $0xc] sm:$0xf] %v2130
        %2159 = vst [vmem:[%s275 + $0x10] sm:$0xf] %v2131
        %2160 = vst [vmem:[%s275 + $0x14] sm:$0xf] %v2132
        %2161 = vst [vmem:[%s275 + $0x18] sm:$0xf] %v2133
        %2162 = vst [vmem:[%s275 + $0x1c] sm:$0xf] %v2134
        %2163 = vst [vmem:[%s275 + $0x20] sm:$0xf] %v2135
        %2164 = vst [vmem:[%s275 + $0x24] sm:$0xf] %v2136
        %2165 = vst [vmem:[%s275 + $0x28] sm:$0xf] %v2137
        %2166 = vst [vmem:[%s275 + $0x2c] sm:$0xf] %v2138
        %2167 = vst [vmem:[%s275 + $0x30] sm:$0xf] %v2139
        %2168 = vst [vmem:[%s275 + $0x34] sm:$0xf] %v2140
        %s2169 = sand.u32 %s138, 1
        %s2170 = sand.u32 %s138, 1
        %s2171 = smul.addr %s2170, 56
        %s2172 = scalar_lea.vmem [#allocation7], %s2171
        // Predicated region
        $region53: #{hierarchical_arcface_forward.1} parent=39 // pred_check
          %p2173 = pneg %p148
        $region54: #{hierarchical_arcface_forward.1} parent=39 // pred_check_branch
          %2175 = sbr.rel (%p2173) target = $region56
        $region55: #{hierarchical_arcface_forward.1} parent=39 // pred_region
          %s2176 = smul.u32 14, %s20
          %s2177 = ssub.s32 25, %s2176
          %p2178 = scmp.lt.s32.totalorder %s2177, 14
          %s2179 = scalar_select %p2178, %s2177, 14
          %s2180 = smul.u32 64, %s2179
          %p2181 = scmp.ne.s32.totalorder 0, %s2180
          %s2182 = smul.addr %s2176, 4
          %s2183 = scalar_lea.vmem %s5, %s2182
          // Predicated region
          $region57: #{hierarchical_arcface_forward.1} parent=55 // pred_check
            %p2184 = pneg %p2181
          $region58: #{hierarchical_arcface_forward.1} parent=55 // pred_check_branch
            %2186 = sbr.rel (%p2184) target = $region60
          $region59: #{hierarchical_arcface_forward.1} parent=55 // pred_region
            // Predicated region
            $region61: #{hierarchical_arcface_forward.1} parent=59 // pred_check
              _
            $region62: #{hierarchical_arcface_forward.1} parent=59 // pred_check_branch
              %2188 = sbr.rel target = $region64
            $region63: #{hierarchical_arcface_forward.1} parent=59 // pred_region
              // Predicated region
              $region83: #{hierarchical_arcface_forward.1} parent=63 // pred_check
                _
              $region84: #{hierarchical_arcface_forward.1} parent=63 // pred_check_branch
                %2264 = sbr.rel (0) target = $region86
              $region85: #{hierarchical_arcface_forward.1} parent=63 // pred_region
                %s2266 = sdiv.u32.pop %s2179, 14
                %s2267 = srem.u32.pop %s2179, 14
                // While loop
                $region87: #{hierarchical_arcface_forward.1} parent=85 // loop_pre_header
                  _
                $region88: #{hierarchical_arcface_forward.1} parent=85 // loop_header
                  %s2269 = sphi 0, %s2271
                  %p2270 = scmp.ge.s32.totalorder %s2269, %s2266
                  %s2274 = sphi 0, %s2307
                  %s2275 = sphi %s2172, %s2310
                  %s2276 = sphi %s2183, %s2311
                $region89: #{hierarchical_arcface_forward.1} parent=85 // loop_header_branch
                  %2273 = sbr.rel (%p2270) target = $region93
                $region90: #{hierarchical_arcface_forward.1} parent=85 // loop_body
                  %v2277 = vld [vmem:[%s2275] sm:$0xf]
                  %2278 = vst [vmem:[%s2276] sm:$0xf] %v2277
                  %v2279 = vld [vmem:[%s2275 + $0x4] sm:$0xf]
                  %2280 = vst [vmem:[%s2276 + $0x4] sm:$0xf] %v2279
                  %v2281 = vld [vmem:[%s2275 + $0x8] sm:$0xf]
                  %2282 = vst [vmem:[%s2276 + $0x8] sm:$0xf] %v2281
                  %v2283 = vld [vmem:[%s2275 + $0xc] sm:$0xf]
                  %2284 = vst [vmem:[%s2276 + $0xc] sm:$0xf] %v2283
                  %v2285 = vld [vmem:[%s2275 + $0x10] sm:$0xf]
                  %2286 = vst [vmem:[%s2276 + $0x10] sm:$0xf] %v2285
                  %v2287 = vld [vmem:[%s2275 + $0x14] sm:$0xf]
                  %2288 = vst [vmem:[%s2276 + $0x14] sm:$0xf] %v2287
                  %v2289 = vld [vmem:[%s2275 + $0x18] sm:$0xf]
                  %2290 = vst [vmem:[%s2276 + $0x18] sm:$0xf] %v2289
                  %v2291 = vld [vmem:[%s2275 + $0x1c] sm:$0xf]
                  %2292 = vst [vmem:[%s2276 + $0x1c] sm:$0xf] %v2291
                  %v2293 = vld [vmem:[%s2275 + $0x20] sm:$0xf]
                  %2294 = vst [vmem:[%s2276 + $0x20] sm:$0xf] %v2293
                  %v2295 = vld [vmem:[%s2275 + $0x24] sm:$0xf]
                  %2296 = vst [vmem:[%s2276 + $0x24] sm:$0xf] %v2295
                  %v2297 = vld [vmem:[%s2275 + $0x28] sm:$0xf]
                  %2298 = vst [vmem:[%s2276 + $0x28] sm:$0xf] %v2297
                  %v2299 = vld [vmem:[%s2275 + $0x2c] sm:$0xf]
                  %2300 = vst [vmem:[%s2276 + $0x2c] sm:$0xf] %v2299
                  %v2301 = vld [vmem:[%s2275 + $0x30] sm:$0xf]
                  %2302 = vst [vmem:[%s2276 + $0x30] sm:$0xf] %v2301
                  %v2303 = vld [vmem:[%s2275 + $0x34] sm:$0xf]
                  %2304 = vst [vmem:[%s2276 + $0x34] sm:$0xf] %v2303
                  %s2305 = sadd.s32 1, %s2274
                  %p2306 = scmp.ge.s32.totalorder %s2305, %s2266
                  %s2307 = scalar_select %p2306, 0, %s2305
                  %s2308 = smul.u32 %s2307, 56
                  %s2309 = smul.u32 %s2307, 56
                  %s2310 = scalar_lea.vmem %s2172, %s2308 [#allocation7]
                  %s2311 = scalar_lea.vmem %s2183, %s2309
                $region91: #{hierarchical_arcface_forward.1} parent=85 // loop_footer
                  %s2271 = sadd.s32 %s2269, 1
                $region92: #{hierarchical_arcface_forward.1} parent=85 // loop_footer_branch
                  %2268 = sbr.rel target = $region88
                $region93: #{hierarchical_arcface_forward.1} parent=85 // loop_exit
                  _
                %s2312 = sdiv.u32.pop %s2179, 14
                %s2313 = srem.u32.pop %s2179, 14
                %s2314 = smul.u32 %s2312, 14
                %s2315 = smul.u32 4, %s2314
                %s2316 = scalar_lea.vmem %s2172, %s2315 [#allocation7]
                %s2317 = smul.u32 4, %s2314
                %s2318 = scalar_lea.vmem %s2183, %s2317
                // While loop
                $region94: #{hierarchical_arcface_forward.1} parent=85 // loop_pre_header
                  _
                $region95: #{hierarchical_arcface_forward.1} parent=85 // loop_header
                  %s2320 = sphi 0, %s2322
                  %p2321 = scmp.ge.s32.totalorder %s2320, %s2313
                  %s2325 = sphi 0, %s2332
                  %s2326 = sphi %s2316, %s2335
                  %s2327 = sphi %s2318, %s2336
                $region96: #{hierarchical_arcface_forward.1} parent=85 // loop_header_branch
                  %2324 = sbr.rel (%p2321) target = $region100
                $region97: #{hierarchical_arcface_forward.1} parent=85 // loop_body
                  %v2328 = vld [vmem:[%s2326] sm:$0xf]
                  %2329 = vst [vmem:[%s2327] sm:$0xf] %v2328
                  %s2330 = sadd.s32 1, %s2325
                  %p2331 = scmp.ge.s32.totalorder %s2330, %s2313
                  %s2332 = scalar_select %p2331, 0, %s2330
                  %s2333 = smul.u32 %s2332, 4
                  %s2334 = smul.u32 %s2332, 4
                  %s2335 = scalar_lea.vmem %s2316, %s2333 [#allocation7]
                  %s2336 = scalar_lea.vmem %s2318, %s2334
                $region98: #{hierarchical_arcface_forward.1} parent=85 // loop_footer
                  %s2322 = sadd.s32 %s2320, 1
                $region99: #{hierarchical_arcface_forward.1} parent=85 // loop_footer_branch
                  %2319 = sbr.rel target = $region95
                $region100: #{hierarchical_arcface_forward.1} parent=85 // loop_exit
                  _
              $region86: #{hierarchical_arcface_forward.1} parent=63 // pred_fallthru
                _
            $region64: #{hierarchical_arcface_forward.1} parent=59 // pred_fallthru
              _
            // Predicated region
            $region65: #{hierarchical_arcface_forward.1} parent=59 // pred_check
              _
            $region66: #{hierarchical_arcface_forward.1} parent=59 // pred_check_branch
              %2190 = sbr.rel (0) target = $region68
            $region67: #{hierarchical_arcface_forward.1} parent=59 // pred_region
              %s2192 = sdiv.u32.pop %s2179, 14
              %s2193 = srem.u32.pop %s2179, 14
              // While loop
              $region69: #{hierarchical_arcface_forward.1} parent=67 // loop_pre_header
                _
              $region70: #{hierarchical_arcface_forward.1} parent=67 // loop_header
                %s2195 = sphi 0, %s2197
                %p2196 = scmp.ge.s32.totalorder %s2195, %s2192
                %s2200 = sphi 0, %s2233
                %s2201 = sphi %s2172, %s2236
                %s2202 = sphi %s2183, %s2237
              $region71: #{hierarchical_arcface_forward.1} parent=67 // loop_header_branch
                %2199 = sbr.rel (%p2196) target = $region75
              $region72: #{hierarchical_arcface_forward.1} parent=67 // loop_body
                %v2203 = vld [vmem:[%s2201] sm:$0xf]
                %2204 = vst [vmem:[%s2202] sm:$0xf] %v2203
                %v2205 = vld [vmem:[%s2201 + $0x4] sm:$0xf]
                %2206 = vst [vmem:[%s2202 + $0x4] sm:$0xf] %v2205
                %v2207 = vld [vmem:[%s2201 + $0x8] sm:$0xf]
                %2208 = vst [vmem:[%s2202 + $0x8] sm:$0xf] %v2207
                %v2209 = vld [vmem:[%s2201 + $0xc] sm:$0xf]
                %2210 = vst [vmem:[%s2202 + $0xc] sm:$0xf] %v2209
                %v2211 = vld [vmem:[%s2201 + $0x10] sm:$0xf]
                %2212 = vst [vmem:[%s2202 + $0x10] sm:$0xf] %v2211
                %v2213 = vld [vmem:[%s2201 + $0x14] sm:$0xf]
                %2214 = vst [vmem:[%s2202 + $0x14] sm:$0xf] %v2213
                %v2215 = vld [vmem:[%s2201 + $0x18] sm:$0xf]
                %2216 = vst [vmem:[%s2202 + $0x18] sm:$0xf] %v2215
                %v2217 = vld [vmem:[%s2201 + $0x1c] sm:$0xf]
                %2218 = vst [vmem:[%s2202 + $0x1c] sm:$0xf] %v2217
                %v2219 = vld [vmem:[%s2201 + $0x20] sm:$0xf]
                %2220 = vst [vmem:[%s2202 + $0x20] sm:$0xf] %v2219
                %v2221 = vld [vmem:[%s2201 + $0x24] sm:$0xf]
                %2222 = vst [vmem:[%s2202 + $0x24] sm:$0xf] %v2221
                %v2223 = vld [vmem:[%s2201 + $0x28] sm:$0xf]
                %2224 = vst [vmem:[%s2202 + $0x28] sm:$0xf] %v2223
                %v2225 = vld [vmem:[%s2201 + $0x2c] sm:$0xf]
                %2226 = vst [vmem:[%s2202 + $0x2c] sm:$0xf] %v2225
                %v2227 = vld [vmem:[%s2201 + $0x30] sm:$0xf]
                %2228 = vst [vmem:[%s2202 + $0x30] sm:$0xf] %v2227
                %v2229 = vld [vmem:[%s2201 + $0x34] sm:$0xf]
                %2230 = vst [vmem:[%s2202 + $0x34] sm:$0xf] %v2229
                %s2231 = sadd.s32 1, %s2200
                %p2232 = scmp.ge.s32.totalorder %s2231, %s2192
                %s2233 = scalar_select %p2232, 0, %s2231
                %s2234 = smul.u32 %s2233, 56
                %s2235 = smul.u32 %s2233, 56
                %s2236 = scalar_lea.vmem %s2172, %s2234 [#allocation7]
                %s2237 = scalar_lea.vmem %s2183, %s2235
              $region73: #{hierarchical_arcface_forward.1} parent=67 // loop_footer
                %s2197 = sadd.s32 %s2195, 1
              $region74: #{hierarchical_arcface_forward.1} parent=67 // loop_footer_branch
                %2194 = sbr.rel target = $region70
              $region75: #{hierarchical_arcface_forward.1} parent=67 // loop_exit
                _
              %s2238 = sdiv.u32.pop %s2179, 14
              %s2239 = srem.u32.pop %s2179, 14
              %s2240 = smul.u32 %s2238, 14
              %s2241 = smul.u32 4, %s2240
              %s2242 = scalar_lea.vmem %s2172, %s2241 [#allocation7]
              %s2243 = smul.u32 4, %s2240
              %s2244 = scalar_lea.vmem %s2183, %s2243
              // While loop
              $region76: #{hierarchical_arcface_forward.1} parent=67 // loop_pre_header
                _
              $region77: #{hierarchical_arcface_forward.1} parent=67 // loop_header
                %s2246 = sphi 0, %s2248
                %p2247 = scmp.ge.s32.totalorder %s2246, %s2239
                %s2251 = sphi 0, %s2258
                %s2252 = sphi %s2242, %s2261
                %s2253 = sphi %s2244, %s2262
              $region78: #{hierarchical_arcface_forward.1} parent=67 // loop_header_branch
                %2250 = sbr.rel (%p2247) target = $region82
              $region79: #{hierarchical_arcface_forward.1} parent=67 // loop_body
                %v2254 = vld [vmem:[%s2252] sm:$0xf]
                %2255 = vst [vmem:[%s2253] sm:$0xf] %v2254
                %s2256 = sadd.s32 1, %s2251
                %p2257 = scmp.ge.s32.totalorder %s2256, %s2239
                %s2258 = scalar_select %p2257, 0, %s2256
                %s2259 = smul.u32 %s2258, 4
                %s2260 = smul.u32 %s2258, 4
                %s2261 = scalar_lea.vmem %s2242, %s2259 [#allocation7]
                %s2262 = scalar_lea.vmem %s2244, %s2260
              $region80: #{hierarchical_arcface_forward.1} parent=67 // loop_footer
                %s2248 = sadd.s32 %s2246, 1
              $region81: #{hierarchical_arcface_forward.1} parent=67 // loop_footer_branch
                %2245 = sbr.rel target = $region77
              $region82: #{hierarchical_arcface_forward.1} parent=67 // loop_exit
                _
            $region68: #{hierarchical_arcface_forward.1} parent=59 // pred_fallthru
              _
          $region60: #{hierarchical_arcface_forward.1} parent=55 // pred_fallthru
            _
          %2337 = vnop
        $region56: #{hierarchical_arcface_forward.1} parent=39 // pred_fallthru
          _
      $region40: #{hierarchical_arcface_forward.1} parent=5 // pred_fallthru
        _
      %p2338 = scmp.le.s32.totalorder 2, %s15
      // Predicated region
      $region101: #{hierarchical_arcface_forward.1} parent=5 // pred_check
        %p2339 = pneg %p2338
      $region102: #{hierarchical_arcface_forward.1} parent=5 // pred_check_branch
        %2341 = sbr.rel (%p2339) target = $region104
      $region103: #{hierarchical_arcface_forward.1} parent=5 // pred_region
        %s2342 = ssub.s32 %s15, 2
        // Predicated region
        $region105: #{hierarchical_arcface_forward.1} parent=103 // pred_check
          %p2343 = pneg %p154
        $region106: #{hierarchical_arcface_forward.1} parent=103 // pred_check_branch
          %2345 = sbr.rel (%p2343) target = $region108
        $region107: #{hierarchical_arcface_forward.1} parent=103 // pred_region
          %s2346 = sand.u32 %s139, 1
          %s2347 = sand.u32 %s139, 1
          %s2348 = smul.addr %s2347, 56
          %s2349 = scalar_lea.vmem [#allocation7], %s2348
        $region108: #{hierarchical_arcface_forward.1} parent=103 // pred_fallthru
          _
      $region104: #{hierarchical_arcface_forward.1} parent=5 // pred_fallthru
        _
    $region6: #{hierarchical_arcface_forward.1} parent=1 // loop_footer
      %s19 = sadd.s32 1, %s15
    $region7: #{hierarchical_arcface_forward.1} parent=1 // loop_footer_branch
      %14 = sbr.rel target = $region3
    $region8: #{hierarchical_arcface_forward.1} parent=1 // loop_exit
      _
    %2350 = vsyncpa [#allocation3], 1
    %s2351 = scalar_lea.sflag [#allocation3], 1
    %2352 = vsyncpa %s2351, 1
    %2353 = vsyncpa [#allocation5], 1

</llo_original>
